<compile_context>
chip_gen: v7x
topology: tpu7x:2x2x1
jax: 0.10.0
libtpu: 0.0.40
codegen_flags: <defaults>
</compile_context>

<pallas_src>
import functools

import jax
import jax.numpy as jnp
from jax.experimental import pallas as pl
from jax.experimental.pallas import tpu as pltpu


# ----------------------------------------------------------------------------
# Small in-kernel helper: result[p, :] = y[p + k, :]  (last k rows zero-filled).
# The zero-filled rows only ever land in right-pad output columns / the last
# image row's pad region, which the wrapper discards.
# ----------------------------------------------------------------------------
def _shift_rows_up(y, k):
    if k == 0:
        return y
    return jnp.concatenate(
        [y[k:, :], jnp.zeros((k, y.shape[1]), y.dtype)], axis=0)


# ----------------------------------------------------------------------------
# Fused Bottleneck kernel (one grid step == one image of the batch)
# ----------------------------------------------------------------------------
def _bottleneck_kernel(xp_ref, mask_ref,
                       w1_ref, w2_ref, w3_ref,
                       s1_ref, b1_ref, s2_ref, b2_ref, s3_ref, b3_ref,
                       o_ref, o1p_ref, *, Wpad, dilation):
    d = dilation
    P = xp_ref.shape[1]            # (H + 2d) * Wpad   (padded grid, flattened)
    HWp = o_ref.shape[1]           # H * Wpad          (output grid, flattened)

    # ---- conv1: 1x1 * sigmoid(info_filt) -> BN -> ReLU, border masked to zero ----
    x_full = xp_ref[0]                                         # (P, Cp) bf16
    acc1 = jnp.dot(x_full, w1_ref[...], preferred_element_type=jnp.float32)
    o1 = jnp.maximum(acc1 * s1_ref[...] + b1_ref[...], 0.0) * mask_ref[...]
    o1p_ref[...] = o1.astype(jnp.bfloat16)                     # bf16 scratch, P rows

    # ---- conv2: 3x3 (stride=1, padding=dilation) ----
    # Aligned per-kh slabs (offset kh*d*Wpad is a multiple of Wpad, Wpad%16==0),
    # concatenated once along K -> (HWp, 3*Wd); 3 dots with K=3*Wd (one per kw).
    # The kw shift is applied to the f32 results (commutes with the matmul).
    big = jnp.concatenate(
        [o1p_ref[pl.ds(kh * d * Wpad, HWp), :] for kh in range(3)], axis=1)
    acc2 = jnp.dot(big, w2_ref[0], preferred_element_type=jnp.float32)
    for kw in (1, 2):
        y = jnp.dot(big, w2_ref[kw], preferred_element_type=jnp.float32)
        acc2 = acc2 + _shift_rows_up(y, kw * d)
    o2 = jnp.maximum(acc2 * s2_ref[...] + b2_ref[...], 0.0).astype(jnp.bfloat16)

    # ---- conv3: 1x1 -> BN (no act) + identity residual + final ReLU ----
    acc3 = jnp.dot(o2, w3_ref[...], preferred_element_type=jnp.float32)
    # Identity read straight from the padded input (no separate HBM stream):
    # aligned slice at d*Wpad, then shift by d rows to line up with the output.
    res = _shift_rows_up(
        x_full[d * Wpad: d * Wpad + HWp, :].astype(jnp.float32), d)
    out = acc3 * s3_ref[...] + b3_ref[...] + res
    o_ref[0] = jnp.maximum(out, 0.0).astype(o_ref.dtype)


# ----------------------------------------------------------------------------
# Plain-JAX glue
# ----------------------------------------------------------------------------
def _round_up(x, m):
    return (x + m - 1) // m * m


def fold_bn_and_gate(info_filt, gamma, beta, running_mean, running_var,
                     eps=1e-5, use_info_filt=True):
    """Fold sigmoid(info_filt) gate + eval-mode BatchNorm into scale/shift."""
    inv = gamma / jnp.sqrt(running_var + eps)
    scale = jax.nn.sigmoid(info_filt) * inv if use_info_filt else inv
    shift = beta - running_mean * inv
    return scale, shift


def make_conv_block_params(key, in_planes, out_planes, kernel_size):
    """Deterministic synthetic parameters mirroring conv_block.__init__ shapes."""
    weight = jax.random.normal(
        key, (out_planes, in_planes, kernel_size, kernel_size), jnp.float32) * 0.1
    return {
        "weight": weight,                                          # (Cout,Cin,kh,kw)
        "info_filt": jnp.full((out_planes,), 10.0, jnp.float32),   # ones * 10
        "gamma": jnp.ones((out_planes,), jnp.float32),
        "beta": jnp.zeros((out_planes,), jnp.float32),
        "running_mean": jnp.zeros((out_planes,), jnp.float32),
        "running_var": jnp.ones((out_planes,), jnp.float32),
    }


def bottleneck_forward(x_nchw, params, stride=1, dilation=1, use_info_filt=True):
    """Bottleneck forward (downsample=None, groups=1, base_width=64)."""
    assert stride == 1, "TODO(synk): stride>1 / downsample path not implemented"
    Nb, Cin, H, W = x_nchw.shape
    d = dilation
    p1, p2, p3 = params["conv1"], params["conv2"], params["conv3"]
    width = p1["weight"].shape[0]
    Cout = p3["weight"].shape[0]
    assert Cin == Cout, "identity residual requires inplanes == planes * expansion"

    # Padded sizes: channels -> multiples of 128 (lane-dense); padded W -> multiple
    # of 16 so bf16 (16,128)-packed slab reads at offsets kh*d*Wpad are tile-aligned.
    Cp = _round_up(Cin, 128)
    Wd = _round_up(width, 128)
    Wpad = _round_up(W + 2 * d, 16)
    Hp = H + 2 * d
    P = Hp * Wpad          # conv-input rows (flattened padded grid)
    HWp = H * Wpad         # output rows (flattened, right-padded W)

    x = jnp.transpose(x_nchw, (0, 2, 3, 1)).astype(jnp.bfloat16)          # NHWC bf16
    # Single input stream: zero-pad spatially (top/bottom/left by d, right up to
    # Wpad) + channels to Cp.  The residual is read from this same slab in-kernel.
    x_pad = jnp.pad(x, ((0, 0), (d, d), (d, Wpad - W - d), (0, Cp - Cin)))
    x_pad = x_pad.reshape(Nb, P, Cp)

    # Interior mask over the padded grid (gives conv2 exact zero-padding after the
    # conv1 BN shift, which would otherwise make border positions non-zero).
    ph = jnp.arange(Hp)[:, None]
    pw = jnp.arange(Wpad)[None, :]
    interior = (ph >= d) & (ph < d + H) & (pw >= d) & (pw < d + W)
    mask = interior.astype(jnp.float32).reshape(P, 1)

    # Weights -> matmul layouts, zero-padded, bf16.
    w1 = (jnp.zeros((Cp, Wd), jnp.float32)
          .at[:Cin, :width].set(p1["weight"].reshape(width, Cin).T)
          .astype(jnp.bfloat16))
    # w2 packed per kw with the kh taps concatenated along K:
    #   w2[kw, kh*Wd + ci, co] = weight[co, ci, kh, kw]
    w2t = jnp.transpose(p2["weight"], (3, 2, 1, 0))            # (kw, kh, ci, co)
    w2 = (jnp.zeros((3, 3, Wd, Wd), jnp.float32)
          .at[:, :, :width, :width].set(w2t)
          .reshape(3, 3 * Wd, Wd)
          .astype(jnp.bfloat16))
    w3 = (jnp.zeros((Wd, Cp), jnp.float32)
          .at[:width, :Cout].set(p3["weight"].reshape(Cout, width).T)
          .astype(jnp.bfloat16))

    def fold(p, n_pad):
        s, b = fold_bn_and_gate(p["info_filt"], p["gamma"], p["beta"],
                                p["running_mean"], p["running_var"],
                                use_info_filt=use_info_filt)
        padn = n_pad - s.shape[0]
        return (jnp.pad(s, (0, padn)).reshape(1, n_pad),
                jnp.pad(b, (0, padn)).reshape(1, n_pad))

    s1, b1 = fold(p1, Wd)
    s2, b2 = fold(p2, Wd)
    s3, b3 = fold(p3, Cp)

    kernel = functools.partial(_bottleneck_kernel, Wpad=Wpad, dilation=d)

    flops = 2 * Nb * (P * Cp * Wd + 9 * HWp * Wd * Wd + HWp * Wd * Cp)
    bytes_accessed = (
        Nb * (P * Cp + HWp * Cp) * 2                     # x_pad + out (bf16)
        + (Cp * Wd + 9 * Wd * Wd + Wd * Cp) * 2          # weights (bf16)
        + (P + 4 * Wd + 2 * Cp) * 4                      # mask + scale/shift (f32)
    )

    out = pl.pallas_call(
        kernel,
        out_shape=jax.ShapeDtypeStruct((Nb, HWp, Cp), jnp.bfloat16),
        grid=(Nb,),
        in_specs=[
            pl.BlockSpec((1, P, Cp), lambda b: (b, 0, 0)),     # x_pad (conv + residual)
            pl.BlockSpec((P, 1), lambda b: (0, 0)),            # interior mask
            pl.BlockSpec((Cp, Wd), lambda b: (0, 0)),          # w1
            pl.BlockSpec((3, 3 * Wd, Wd), lambda b: (0, 0, 0)),  # w2 (per kw, K=3*Wd)
            pl.BlockSpec((Wd, Cp), lambda b: (0, 0)),          # w3
            pl.BlockSpec((1, Wd), lambda b: (0, 0)),           # scale1
            pl.BlockSpec((1, Wd), lambda b: (0, 0)),           # shift1
            pl.BlockSpec((1, Wd), lambda b: (0, 0)),           # scale2
            pl.BlockSpec((1, Wd), lambda b: (0, 0)),           # shift2
            pl.BlockSpec((1, Cp), lambda b: (0, 0)),           # scale3
            pl.BlockSpec((1, Cp), lambda b: (0, 0)),           # shift3
        ],
        out_specs=pl.BlockSpec((1, HWp, Cp), lambda b: (b, 0, 0)),
        scratch_shapes=[pltpu.VMEM((P, Wd), jnp.bfloat16)],    # zero-padded o1 (bf16)
        compiler_params=pltpu.CompilerParams(
            dimension_semantics=("parallel",),
            vmem_limit_bytes=48 * 1024 * 1024,
        ),
        cost_estimate=pl.CostEstimate(flops=flops, transcendentals=0,
                                      bytes_accessed=bytes_accessed),
    )(x_pad, mask, w1, w2, w3, s1, b1, s2, b2, s3, b3)

    out = out.reshape(Nb, H, Wpad, Cp)[:, :, :W, :Cout]        # drop padding
    return jnp.transpose(out, (0, 3, 1, 2)).astype(x_nchw.dtype)   # back to NCHW


# ----------------------------------------------------------------------------
# Pure-JAX reference (eval-mode BN, sigmoid(info_filt) gate) for a sanity check
# ----------------------------------------------------------------------------
def _conv_block_reference(xb, p, *, padding, dilation, activation,
                          use_info_filt, eps=1e-5):
    out = jax.lax.conv_general_dilated(
        xb, p["weight"], window_strides=(1, 1),
        padding=((padding, padding), (padding, padding)),
        rhs_dilation=(dilation, dilation),
        dimension_numbers=("NCHW", "OIHW", "NCHW"),
        precision=jax.lax.Precision.HIGHEST)
    if use_info_filt:
        out = out * jax.nn.sigmoid(p["info_filt"])[None, :, None, None]
    inv = (p["gamma"] / jnp.sqrt(p["running_var"] + eps))[None, :, None, None]
    out = (out - p["running_mean"][None, :, None, None]) * inv \
        + p["beta"][None, :, None, None]
    if activation:
        out = jnp.maximum(out, 0.0)
    return out


def bottleneck_reference(x, params, dilation=1, use_info_filt=True):
    o = _conv_block_reference(x, params["conv1"], padding=0, dilation=1,
                              activation=True, use_info_filt=use_info_filt)
    o = _conv_block_reference(o, params["conv2"], padding=dilation,
                              dilation=dilation, activation=True,
                              use_info_filt=use_info_filt)
    o = _conv_block_reference(o, params["conv3"], padding=0, dilation=1,
                              activation=False, use_info_filt=use_info_filt)
    return jnp.maximum(o + x, 0.0)


if __name__ == "__main__":
    key = jax.random.PRNGKey(0)
    k_x, k1, k2, k3 = jax.random.split(key, 4)

    # Small shapes: inplanes = planes * expansion so the identity path matches.
    Nb, planes, expansion = 2, 4, 4
    inplanes = planes * expansion        # 16
    width = planes                       # base_width=64, groups=1 -> width = planes
    H = W = 8
    stride, dilation = 1, 1

    x = jax.random.normal(k_x, (Nb, inplanes, H, W), jnp.float32)

    params = {
        "conv1": make_conv_block_params(k1, inplanes, width, 1),
        "conv2": make_conv_block_params(k2, width, width, 3),
        "conv3": make_conv_block_params(k3, width, planes * expansion, 1),
    }

    fwd = jax.jit(functools.partial(bottleneck_forward, stride=stride,
                                    dilation=dilation, use_info_filt=True))
    out = fwd(x, params)
    jax.block_until_ready(out)
    assert out.shape == (Nb, planes * expansion, H, W)
    assert bool(jnp.isfinite(out).all())

    # Correctness check vs. a pure-JAX f32 reference (bf16 activation tolerance).
    ref = bottleneck_reference(x, params, dilation=dilation, use_info_filt=True)
    max_err = float(jnp.max(jnp.abs(out - ref)))
    assert max_err < 1e-1, f"max |kernel - reference| = {max_err}"

    print("KERNEL_OK")
</pallas_src>

<mosaic_0001>
module attributes {stable_mosaic.version = 11 : i64} {
  func.func @_bottleneck_kernel(%arg0: i32, %arg1: memref<1x160x128xbf16, #tpu.memory_space<vmem>>, %arg2: memref<160x1xf32, #tpu.memory_space<vmem>>, %arg3: memref<128x128xbf16, #tpu.memory_space<vmem>>, %arg4: memref<3x384x128xbf16, #tpu.memory_space<vmem>>, %arg5: memref<128x128xbf16, #tpu.memory_space<vmem>>, %arg6: memref<1x128xf32, #tpu.memory_space<vmem>>, %arg7: memref<1x128xf32, #tpu.memory_space<vmem>>, %arg8: memref<1x128xf32, #tpu.memory_space<vmem>>, %arg9: memref<1x128xf32, #tpu.memory_space<vmem>>, %arg10: memref<1x128xf32, #tpu.memory_space<vmem>>, %arg11: memref<1x128xf32, #tpu.memory_space<vmem>>, %arg12: memref<1x128x128xbf16, #tpu.memory_space<vmem>>, %arg13: memref<160x128xbf16, #tpu.memory_space<vmem>>) attributes {dimension_semantics = [#tpu.dimension_semantics<parallel>], iteration_bounds = array<i64: 2>, scalar_prefetch = 0 : i64, scratch_operands = 1 : i64, tpu.core_type = #tpu.core_type<tc>, window_params = [{transform_indices = @transform_0, window_bounds = array<i64: 1, 160, 128>}, {pipeline_mode = #tpu.pipeline_mode<synchronous>, transform_indices = @transform_1, window_bounds = array<i64: 160, 1>}, {pipeline_mode = #tpu.pipeline_mode<synchronous>, transform_indices = @transform_2, window_bounds = array<i64: 128, 128>}, {pipeline_mode = #tpu.pipeline_mode<synchronous>, transform_indices = @transform_3, window_bounds = array<i64: 3, 384, 128>}, {pipeline_mode = #tpu.pipeline_mode<synchronous>, transform_indices = @transform_4, window_bounds = array<i64: 128, 128>}, {pipeline_mode = #tpu.pipeline_mode<synchronous>, transform_indices = @transform_5, window_bounds = array<i64: 1, 128>}, {pipeline_mode = #tpu.pipeline_mode<synchronous>, transform_indices = @transform_6, window_bounds = array<i64: 1, 128>}, {pipeline_mode = #tpu.pipeline_mode<synchronous>, transform_indices = @transform_7, window_bounds = array<i64: 1, 128>}, {pipeline_mode = #tpu.pipeline_mode<synchronous>, transform_indices = @transform_8, window_bounds = array<i64: 1, 128>}, {pipeline_mode = #tpu.pipeline_mode<synchronous>, transform_indices = @transform_9, window_bounds = array<i64: 1, 128>}, {pipeline_mode = #tpu.pipeline_mode<synchronous>, transform_indices = @transform_10, window_bounds = array<i64: 1, 128>}, {transform_indices = @transform_11, window_bounds = array<i64: 1, 128, 128>}]} {
    %c0 = arith.constant 0 : index
    %c0_0 = arith.constant 0 : index
    %c0_1 = arith.constant 0 : index
    %0 = vector.load %arg1[%c0, %c0_0, %c0_1] : memref<1x160x128xbf16, #tpu.memory_space<vmem>>, vector<1x160x128xbf16>
    %1 = vector.shape_cast %0 : vector<1x160x128xbf16> to vector<160x128xbf16>
    %c0_2 = arith.constant 0 : index
    %c0_3 = arith.constant 0 : index
    %2 = vector.load %arg3[%c0_2, %c0_3] : memref<128x128xbf16, #tpu.memory_space<vmem>>, vector<128x128xbf16>
    %cst = arith.constant dense<0.000000e+00> : vector<160x128xf32>
    %3 = tpu.matmul %1, %2, %cst {dimension_numbers = #tpu.dot_dimension_numbers<[1], [0], [0], [1], [0, 0, 1, 1], [], []>} : vector<160x128xbf16>, vector<128x128xbf16>, vector<160x128xf32> -> vector<160x128xf32>
    %c0_4 = arith.constant 0 : index
    %c0_5 = arith.constant 0 : index
    %4 = vector.load %arg6[%c0_4, %c0_5] : memref<1x128xf32, #tpu.memory_space<vmem>>, vector<1x128xf32>
    %5 = vector.broadcast %4 : vector<1x128xf32> to vector<160x128xf32>
    %6 = arith.mulf %3, %5 : vector<160x128xf32>
    %c0_6 = arith.constant 0 : index
    %c0_7 = arith.constant 0 : index
    %7 = vector.load %arg7[%c0_6, %c0_7] : memref<1x128xf32, #tpu.memory_space<vmem>>, vector<1x128xf32>
    %8 = vector.broadcast %7 : vector<1x128xf32> to vector<160x128xf32>
    %9 = arith.addf %6, %8 : vector<160x128xf32>
    %cst_8 = arith.constant 0.000000e+00 : f32
    %10 = vector.broadcast %cst_8 : f32 to vector<160x128xf32>
    %11 = arith.maximumf %9, %10 : vector<160x128xf32>
    %c0_9 = arith.constant 0 : index
    %c0_10 = arith.constant 0 : index
    %12 = vector.load %arg2[%c0_9, %c0_10] : memref<160x1xf32, #tpu.memory_space<vmem>>, vector<160x1xf32>
    %13 = vector.broadcast %12 : vector<160x1xf32> to vector<160x128xf32>
    %14 = arith.mulf %11, %13 : vector<160x128xf32>
    %15 = arith.truncf %14 : vector<160x128xf32> to vector<160x128xbf16>
    %c0_11 = arith.constant 0 : index
    %c0_12 = arith.constant 0 : index
    %16 = vector.load %arg13[%c0_11, %c0_12] : memref<160x128xbf16, #tpu.memory_space<vmem>>, vector<160x128xbf16>
    tpu.vector_store %arg13[%c0_11, %c0_12], %15 {strides = array<i32>} : memref<160x128xbf16, #tpu.memory_space<vmem>>, vector<160x128xbf16>,
    %c0_13 = arith.constant 0 : index
    %c0_14 = arith.constant 0 : index
    %17 = vector.load %arg13[%c0_13, %c0_14] : memref<160x128xbf16, #tpu.memory_space<vmem>>, vector<128x128xbf16>
    %c16 = arith.constant 16 : index
    %c0_15 = arith.constant 0 : index
    %18 = vector.load %arg13[%c16, %c0_15] : memref<160x128xbf16, #tpu.memory_space<vmem>>, vector<128x128xbf16>
    %c32 = arith.constant 32 : index
    %c0_16 = arith.constant 0 : index
    %19 = vector.load %arg13[%c32, %c0_16] : memref<160x128xbf16, #tpu.memory_space<vmem>>, vector<128x128xbf16>
    %20 = tpu.concatenate %17, %18, %19 in 1 : vector<128x128xbf16>, vector<128x128xbf16>, vector<128x128xbf16> -> vector<128x384xbf16>
    %c0_17 = arith.constant 0 : index
    %c0_18 = arith.constant 0 : index
    %c0_19 = arith.constant 0 : index
    %21 = vector.load %arg4[%c0_17, %c0_18, %c0_19] : memref<3x384x128xbf16, #tpu.memory_space<vmem>>, vector<1x384x128xbf16>
    %22 = vector.shape_cast %21 : vector<1x384x128xbf16> to vector<384x128xbf16>
    %cst_20 = arith.constant dense<0.000000e+00> : vector<128x128xf32>
    %23 = tpu.matmul %20, %22, %cst_20 {dimension_numbers = #tpu.dot_dimension_numbers<[1], [0], [0], [1], [0, 0, 1, 1], [], []>} : vector<128x384xbf16>, vector<384x128xbf16>, vector<128x128xf32> -> vector<128x128xf32>
    %c1 = arith.constant 1 : index
    %c0_21 = arith.constant 0 : index
    %c0_22 = arith.constant 0 : index
    %24 = vector.load %arg4[%c1, %c0_21, %c0_22] : memref<3x384x128xbf16, #tpu.memory_space<vmem>>, vector<1x384x128xbf16>
    %25 = vector.shape_cast %24 : vector<1x384x128xbf16> to vector<384x128xbf16>
    %cst_23 = arith.constant dense<0.000000e+00> : vector<128x128xf32>
    %26 = tpu.matmul %20, %25, %cst_23 {dimension_numbers = #tpu.dot_dimension_numbers<[1], [0], [0], [1], [0, 0, 1, 1], [], []>} : vector<128x384xbf16>, vector<384x128xbf16>, vector<128x128xf32> -> vector<128x128xf32>
    %27 = vector.extract_strided_slice %26 {offsets = [1, 0], sizes = [127, 128], strides = [1, 1]} : vector<128x128xf32> to vector<127x128xf32>
    %cst_24 = arith.constant 0.000000e+00 : f32
    %28 = vector.broadcast %cst_24 : f32 to vector<1x128xf32>
    %29 = tpu.concatenate %27, %28 in 0 : vector<127x128xf32>, vector<1x128xf32> -> vector<128x128xf32>
    %30 = arith.addf %23, %29 : vector<128x128xf32>
    %c2 = arith.constant 2 : index
    %c0_25 = arith.constant 0 : index
    %c0_26 = arith.constant 0 : index
    %31 = vector.load %arg4[%c2, %c0_25, %c0_26] : memref<3x384x128xbf16, #tpu.memory_space<vmem>>, vector<1x384x128xbf16>
    %32 = vector.shape_cast %31 : vector<1x384x128xbf16> to vector<384x128xbf16>
    %cst_27 = arith.constant dense<0.000000e+00> : vector<128x128xf32>
    %33 = tpu.matmul %20, %32, %cst_27 {dimension_numbers = #tpu.dot_dimension_numbers<[1], [0], [0], [1], [0, 0, 1, 1], [], []>} : vector<128x384xbf16>, vector<384x128xbf16>, vector<128x128xf32> -> vector<128x128xf32>
    %34 = vector.extract_strided_slice %33 {offsets = [2, 0], sizes = [126, 128], strides = [1, 1]} : vector<128x128xf32> to vector<126x128xf32>
    %cst_28 = arith.constant 0.000000e+00 : f32
    %35 = vector.broadcast %cst_28 : f32 to vector<2x128xf32>
    %36 = tpu.concatenate %34, %35 in 0 : vector<126x128xf32>, vector<2x128xf32> -> vector<128x128xf32>
    %37 = arith.addf %30, %36 : vector<128x128xf32>
    %c0_29 = arith.constant 0 : index
    %c0_30 = arith.constant 0 : index
    %38 = vector.load %arg8[%c0_29, %c0_30] : memref<1x128xf32, #tpu.memory_space<vmem>>, vector<1x128xf32>
    %39 = vector.broadcast %38 : vector<1x128xf32> to vector<128x128xf32>
    %40 = arith.mulf %37, %39 : vector<128x128xf32>
    %c0_31 = arith.constant 0 : index
    %c0_32 = arith.constant 0 : index
    %41 = vector.load %arg9[%c0_31, %c0_32] : memref<1x128xf32, #tpu.memory_space<vmem>>, vector<1x128xf32>
    %42 = vector.broadcast %41 : vector<1x128xf32> to vector<128x128xf32>
    %43 = arith.addf %40, %42 : vector<128x128xf32>
    %cst_33 = arith.constant 0.000000e+00 : f32
    %44 = vector.broadcast %cst_33 : f32 to vector<128x128xf32>
    %45 = arith.maximumf %43, %44 : vector<128x128xf32>
    %46 = arith.truncf %45 : vector<128x128xf32> to vector<128x128xbf16>
    %c0_34 = arith.constant 0 : index
    %c0_35 = arith.constant 0 : index
    %47 = vector.load %arg5[%c0_34, %c0_35] : memref<128x128xbf16, #tpu.memory_space<vmem>>, vector<128x128xbf16>
    %cst_36 = arith.constant dense<0.000000e+00> : vector<128x128xf32>
    %48 = tpu.matmul %46, %47, %cst_36 {dimension_numbers = #tpu.dot_dimension_numbers<[1], [0], [0], [1], [0, 0, 1, 1], [], []>} : vector<128x128xbf16>, vector<128x128xbf16>, vector<128x128xf32> -> vector<128x128xf32>
    %49 = vector.extract_strided_slice %1 {offsets = [16, 0], sizes = [128, 128], strides = [1, 1]} : vector<160x128xbf16> to vector<128x128xbf16>
    %50 = arith.extf %49 : vector<128x128xbf16> to vector<128x128xf32>
    %51 = vector.extract_strided_slice %50 {offsets = [1, 0], sizes = [127, 128], strides = [1, 1]} : vector<128x128xf32> to vector<127x128xf32>
    %cst_37 = arith.constant 0.000000e+00 : f32
    %52 = vector.broadcast %cst_37 : f32 to vector<1x128xf32>
    %53 = tpu.concatenate %51, %52 in 0 : vector<127x128xf32>, vector<1x128xf32> -> vector<128x128xf32>
    %c0_38 = arith.constant 0 : index
    %c0_39 = arith.constant 0 : index
    %54 = vector.load %arg10[%c0_38, %c0_39] : memref<1x128xf32, #tpu.memory_space<vmem>>, vector<1x128xf32>
    %55 = vector.broadcast %54 : vector<1x128xf32> to vector<128x128xf32>
    %56 = arith.mulf %48, %55 : vector<128x128xf32>
    %c0_40 = arith.constant 0 : index
    %c0_41 = arith.constant 0 : index
    %57 = vector.load %arg11[%c0_40, %c0_41] : memref<1x128xf32, #tpu.memory_space<vmem>>, vector<1x128xf32>
    %58 = vector.broadcast %57 : vector<1x128xf32> to vector<128x128xf32>
    %59 = arith.addf %56, %58 : vector<128x128xf32>
    %60 = arith.addf %59, %53 : vector<128x128xf32>
    %cst_42 = arith.constant 0.000000e+00 : f32
    %61 = vector.broadcast %cst_42 : f32 to vector<128x128xf32>
    %62 = arith.maximumf %60, %61 : vector<128x128xf32>
    %63 = arith.truncf %62 : vector<128x128xf32> to vector<128x128xbf16>
    %c0_43 = arith.constant 0 : index
    %c0_44 = arith.constant 0 : index
    %c0_45 = arith.constant 0 : index
    %64 = vector.load %arg12[%c0_43, %c0_44, %c0_45] : memref<1x128x128xbf16, #tpu.memory_space<vmem>>, vector<1x128x128xbf16>
    %65 = vector.shape_cast %64 : vector<1x128x128xbf16> to vector<128x128xbf16>
    %66 = vector.shape_cast %63 : vector<128x128xbf16> to vector<1x128x128xbf16>
    tpu.vector_store %arg12[%c0_43, %c0_44, %c0_45], %66 {strides = array<i32>} : memref<1x128x128xbf16, #tpu.memory_space<vmem>>, vector<1x128x128xbf16>,
    return
  }
  func.func @transform_0(%arg0: i32) -> (i32, i32, i32) {
    %c0_i32 = arith.constant 0 : i32
    %c0_i32_0 = arith.constant 0 : i32
    %c0_i32_1 = arith.constant 0 : i32
    return %arg0, %c0_i32, %c0_i32_0 : i32, i32, i32
  }
  func.func @transform_1(%arg0: i32) -> (i32, i32) {
    %c0_i32 = arith.constant 0 : i32
    %c0_i32_0 = arith.constant 0 : i32
    %c0_i32_1 = arith.constant 0 : i32
    return %c0_i32, %c0_i32_0 : i32, i32
  }
  func.func @transform_2(%arg0: i32) -> (i32, i32) {
    %c0_i32 = arith.constant 0 : i32
    %c0_i32_0 = arith.constant 0 : i32
    %c0_i32_1 = arith.constant 0 : i32
    return %c0_i32, %c0_i32_0 : i32, i32
  }
  func.func @transform_3(%arg0: i32) -> (i32, i32, i32) {
    %c0_i32 = arith.constant 0 : i32
    %c0_i32_0 = arith.constant 0 : i32
    %c0_i32_1 = arith.constant 0 : i32
    %c0_i32_2 = arith.constant 0 : i32
    return %c0_i32, %c0_i32_0, %c0_i32_1 : i32, i32, i32
  }
  func.func @transform_4(%arg0: i32) -> (i32, i32) {
    %c0_i32 = arith.constant 0 : i32
    %c0_i32_0 = arith.constant 0 : i32
    %c0_i32_1 = arith.constant 0 : i32
    return %c0_i32, %c0_i32_0 : i32, i32
  }
  func.func @transform_5(%arg0: i32) -> (i32, i32) {
    %c0_i32 = arith.constant 0 : i32
    %c0_i32_0 = arith.constant 0 : i32
    %c0_i32_1 = arith.constant 0 : i32
    return %c0_i32, %c0_i32_0 : i32, i32
  }
  func.func @transform_6(%arg0: i32) -> (i32, i32) {
    %c0_i32 = arith.constant 0 : i32
    %c0_i32_0 = arith.constant 0 : i32
    %c0_i32_1 = arith.constant 0 : i32
    return %c0_i32, %c0_i32_0 : i32, i32
  }
  func.func @transform_7(%arg0: i32) -> (i32, i32) {
    %c0_i32 = arith.constant 0 : i32
    %c0_i32_0 = arith.constant 0 : i32
    %c0_i32_1 = arith.constant 0 : i32
    return %c0_i32, %c0_i32_0 : i32, i32
  }
  func.func @transform_8(%arg0: i32) -> (i32, i32) {
    %c0_i32 = arith.constant 0 : i32
    %c0_i32_0 = arith.constant 0 : i32
    %c0_i32_1 = arith.constant 0 : i32
    return %c0_i32, %c0_i32_0 : i32, i32
  }
  func.func @transform_9(%arg0: i32) -> (i32, i32) {
    %c0_i32 = arith.constant 0 : i32
    %c0_i32_0 = arith.constant 0 : i32
    %c0_i32_1 = arith.constant 0 : i32
    return %c0_i32, %c0_i32_0 : i32, i32
  }
  func.func @transform_10(%arg0: i32) -> (i32, i32) {
    %c0_i32 = arith.constant 0 : i32
    %c0_i32_0 = arith.constant 0 : i32
    %c0_i32_1 = arith.constant 0 : i32
    return %c0_i32, %c0_i32_0 : i32, i32
  }
  func.func @transform_11(%arg0: i32) -> (i32, i32, i32) {
    %c0_i32 = arith.constant 0 : i32
    %c0_i32_0 = arith.constant 0 : i32
    %c0_i32_1 = arith.constant 0 : i32
    return %arg0, %c0_i32, %c0_i32_0 : i32, i32, i32
  }
}

</mosaic_0001>

<llo_original>
// kernel: bottleneck_forward.1
$region0: #{bottleneck_forward.1}
  #allocation0 [shape = 'u32[]', space=smem, size = 0x4, offset = 0x4, fixed_abs, tag = 'smem constant byte address 0x4 - core index']
  #allocation1 [shape = 'u32[144,128]{1,0:T(1,128)}', space=vmem, size = 0x12000, scoped, tag = 'internal scratch']
  #allocation2 [shape = 'bf16[160,128]{1,0:T(16,128)(2,1)}', space=vmem, size = 0xa000, scoped, tag = 'scratch operand']
  %s0 = inlined_call_operand.vmem [shape: bf16[2,160,128], index: 0, kind: input, shape index: {}]
  %s1 = inlined_call_operand.vmem [shape: f32[160,1], index: 1, kind: input, shape index: {}]
  %s2 = inlined_call_operand.vmem [shape: bf16[128,128], index: 2, kind: input, shape index: {}]
  %s3 = inlined_call_operand.vmem [shape: bf16[3,384,128], index: 3, kind: input, shape index: {}]
  %s4 = inlined_call_operand.vmem [shape: bf16[128,128], index: 4, kind: input, shape index: {}]
  %s5 = inlined_call_operand.vmem [shape: f32[1,128], index: 5, kind: input, shape index: {}]
  %s6 = inlined_call_operand.vmem [shape: f32[1,128], index: 6, kind: input, shape index: {}]
  %s7 = inlined_call_operand.vmem [shape: f32[1,128], index: 7, kind: input, shape index: {}]
  %s8 = inlined_call_operand.vmem [shape: f32[1,128], index: 8, kind: input, shape index: {}]
  %s9 = inlined_call_operand.vmem [shape: f32[1,128], index: 9, kind: input, shape index: {}]
  %s10 = inlined_call_operand.vmem [shape: f32[1,128], index: 10, kind: input, shape index: {}]
  %s11 = inlined_call_operand.vmem [shape: bf16[2,128,128], index: 11, kind: output, shape index: {}]
  %s12 = sld [smem:[#allocation0]]
  $region77: #{bottleneck_forward.1} parent=0
    _
  %s14 = ssub.s32 1, %s12
  %s15 = scalar_select 0, %s14, %s12
  loop: start=0, step=1, limit=4
  $region2: #{bottleneck_forward.1} parent=0 // loop_pre_header
    _
  $region3: #{bottleneck_forward.1} parent=0 // loop_header
    %s17 = sphi 0, %s21
    %p18 = scmp.ge.s32.totalorder %s17, 4
    %s27 = sphi 0, %s29
    %s30 = sphi 0, %s27
    %s31 = sphi 0, %s30
    %s47 = sphi 0, %s31
    %s51 = sphi 0, %s51
    %s53 = sphi 0, %s51
    %s54 = sphi 0, %s53
    %s68 = sphi 0, %s54
    %s72 = sphi 0, %s72
    %s74 = sphi 0, %s72
    %s75 = sphi 0, %s74
    %s89 = sphi 0, %s75
    %s93 = sphi 0, %s93
    %s95 = sphi 0, %s93
    %s96 = sphi 0, %s95
    %s110 = sphi 0, %s96
    %s114 = sphi 0, %s114
    %s116 = sphi 0, %s114
    %s117 = sphi 0, %s116
    %s131 = sphi 0, %s117
    %s135 = sphi 0, %s135
    %s137 = sphi 0, %s135
    %s138 = sphi 0, %s137
    %s152 = sphi 0, %s138
    %s156 = sphi 0, %s156
    %s158 = sphi 0, %s156
    %s159 = sphi 0, %s158
    %s173 = sphi 0, %s159
    %s177 = sphi 0, %s177
    %s179 = sphi 0, %s177
    %s180 = sphi 0, %s179
    %s194 = sphi 0, %s180
    %s198 = sphi 0, %s198
    %s200 = sphi 0, %s198
    %s201 = sphi 0, %s200
    %s215 = sphi 0, %s201
    %s219 = sphi 0, %s219
    %s221 = sphi 0, %s219
    %s222 = sphi 0, %s221
    %s236 = sphi 0, %s222
    %s240 = sphi 0, %s240
    %s242 = sphi 0, %s240
    %s243 = sphi 0, %s242
    %s257 = sphi 0, %s243
    %s263 = sphi 0, %s265
    %s266 = sphi 0, %s263
    %s267 = sphi 0, %s266
    %s283 = sphi 0, %s267
  $region4: #{bottleneck_forward.1} parent=0 // loop_header_branch
    %20 = sbr.rel (%p18) target = $region8
  $region5: #{bottleneck_forward.1} parent=0 // loop_body
    %s22 = ssub.s32 %s17, 1
    %s23 = ssub.s32 %s17, 2
    %s24 = sadd.s32 %s17, 1
    %s25 = ssub.s32 %s17, %s24
    %p26 = scmp.eq.s32.totalorder %s25, 0
    %s28 = sadd.s32 %s27, 1
    %s29 = scalar_select %p26, %s27, %s28
    %p32 = pneg %p26
    %p33 = scmp.eq.s32.totalorder %s17, 1
    %p34 = por %p32, %p33
    %p35 = scmp.ne.s32.totalorder %s27, %s30
    %p36 = scmp.eq.s32.totalorder %s17, 0
    %p37 = por %p35, %p36
    %p38 = scmp.ne.s32.totalorder %s27, %s30
    %p39 = scmp.eq.s32.totalorder %s22, 1
    %p40 = por %p38, %p39
    %p41 = scmp.ne.s32.totalorder %s30, %s31
    %p42 = scmp.eq.s32.totalorder %s22, 0
    %p43 = por %p41, %p42
    %p44 = scmp.ne.s32.totalorder %s30, %s31
    %p45 = scmp.eq.s32.totalorder %s23, 1
    %p46 = por %p44, %p45
    %p48 = scmp.ne.s32.totalorder %s31, %s47
    %p49 = scmp.eq.s32.totalorder %s23, 0
    %p50 = por %p48, %p49
    %s52 = sadd.s32 %s51, 1
    %p55 = scmp.eq.s32.totalorder %s17, 1
    %p56 = scmp.ne.s32.totalorder %s51, %s53
    %p57 = scmp.eq.s32.totalorder %s17, 0
    %p58 = por %p56, %p57
    %p59 = scmp.ne.s32.totalorder %s51, %s53
    %p60 = scmp.eq.s32.totalorder %s22, 1
    %p61 = por %p59, %p60
    %p62 = scmp.ne.s32.totalorder %s53, %s54
    %p63 = scmp.eq.s32.totalorder %s22, 0
    %p64 = por %p62, %p63
    %p65 = scmp.ne.s32.totalorder %s53, %s54
    %p66 = scmp.eq.s32.totalorder %s23, 1
    %p67 = por %p65, %p66
    %p69 = scmp.ne.s32.totalorder %s54, %s68
    %p70 = scmp.eq.s32.totalorder %s23, 0
    %p71 = por %p69, %p70
    %s73 = sadd.s32 %s72, 1
    %p76 = scmp.eq.s32.totalorder %s17, 1
    %p77 = scmp.ne.s32.totalorder %s72, %s74
    %p78 = scmp.eq.s32.totalorder %s17, 0
    %p79 = por %p77, %p78
    %p80 = scmp.ne.s32.totalorder %s72, %s74
    %p81 = scmp.eq.s32.totalorder %s22, 1
    %p82 = por %p80, %p81
    %p83 = scmp.ne.s32.totalorder %s74, %s75
    %p84 = scmp.eq.s32.totalorder %s22, 0
    %p85 = por %p83, %p84
    %p86 = scmp.ne.s32.totalorder %s74, %s75
    %p87 = scmp.eq.s32.totalorder %s23, 1
    %p88 = por %p86, %p87
    %p90 = scmp.ne.s32.totalorder %s75, %s89
    %p91 = scmp.eq.s32.totalorder %s23, 0
    %p92 = por %p90, %p91
    %s94 = sadd.s32 %s93, 1
    %p97 = scmp.eq.s32.totalorder %s17, 1
    %p98 = scmp.ne.s32.totalorder %s93, %s95
    %p99 = scmp.eq.s32.totalorder %s17, 0
    %p100 = por %p98, %p99
    %p101 = scmp.ne.s32.totalorder %s93, %s95
    %p102 = scmp.eq.s32.totalorder %s22, 1
    %p103 = por %p101, %p102
    %p104 = scmp.ne.s32.totalorder %s95, %s96
    %p105 = scmp.eq.s32.totalorder %s22, 0
    %p106 = por %p104, %p105
    %p107 = scmp.ne.s32.totalorder %s95, %s96
    %p108 = scmp.eq.s32.totalorder %s23, 1
    %p109 = por %p107, %p108
    %p111 = scmp.ne.s32.totalorder %s96, %s110
    %p112 = scmp.eq.s32.totalorder %s23, 0
    %p113 = por %p111, %p112
    %s115 = sadd.s32 %s114, 1
    %p118 = scmp.eq.s32.totalorder %s17, 1
    %p119 = scmp.ne.s32.totalorder %s114, %s116
    %p120 = scmp.eq.s32.totalorder %s17, 0
    %p121 = por %p119, %p120
    %p122 = scmp.ne.s32.totalorder %s114, %s116
    %p123 = scmp.eq.s32.totalorder %s22, 1
    %p124 = por %p122, %p123
    %p125 = scmp.ne.s32.totalorder %s116, %s117
    %p126 = scmp.eq.s32.totalorder %s22, 0
    %p127 = por %p125, %p126
    %p128 = scmp.ne.s32.totalorder %s116, %s117
    %p129 = scmp.eq.s32.totalorder %s23, 1
    %p130 = por %p128, %p129
    %p132 = scmp.ne.s32.totalorder %s117, %s131
    %p133 = scmp.eq.s32.totalorder %s23, 0
    %p134 = por %p132, %p133
    %s136 = sadd.s32 %s135, 1
    %p139 = scmp.eq.s32.totalorder %s17, 1
    %p140 = scmp.ne.s32.totalorder %s135, %s137
    %p141 = scmp.eq.s32.totalorder %s17, 0
    %p142 = por %p140, %p141
    %p143 = scmp.ne.s32.totalorder %s135, %s137
    %p144 = scmp.eq.s32.totalorder %s22, 1
    %p145 = por %p143, %p144
    %p146 = scmp.ne.s32.totalorder %s137, %s138
    %p147 = scmp.eq.s32.totalorder %s22, 0
    %p148 = por %p146, %p147
    %p149 = scmp.ne.s32.totalorder %s137, %s138
    %p150 = scmp.eq.s32.totalorder %s23, 1
    %p151 = por %p149, %p150
    %p153 = scmp.ne.s32.totalorder %s138, %s152
    %p154 = scmp.eq.s32.totalorder %s23, 0
    %p155 = por %p153, %p154
    %s157 = sadd.s32 %s156, 1
    %p160 = scmp.eq.s32.totalorder %s17, 1
    %p161 = scmp.ne.s32.totalorder %s156, %s158
    %p162 = scmp.eq.s32.totalorder %s17, 0
    %p163 = por %p161, %p162
    %p164 = scmp.ne.s32.totalorder %s156, %s158
    %p165 = scmp.eq.s32.totalorder %s22, 1
    %p166 = por %p164, %p165
    %p167 = scmp.ne.s32.totalorder %s158, %s159
    %p168 = scmp.eq.s32.totalorder %s22, 0
    %p169 = por %p167, %p168
    %p170 = scmp.ne.s32.totalorder %s158, %s159
    %p171 = scmp.eq.s32.totalorder %s23, 1
    %p172 = por %p170, %p171
    %p174 = scmp.ne.s32.totalorder %s159, %s173
    %p175 = scmp.eq.s32.totalorder %s23, 0
    %p176 = por %p174, %p175
    %s178 = sadd.s32 %s177, 1
    %p181 = scmp.eq.s32.totalorder %s17, 1
    %p182 = scmp.ne.s32.totalorder %s177, %s179
    %p183 = scmp.eq.s32.totalorder %s17, 0
    %p184 = por %p182, %p183
    %p185 = scmp.ne.s32.totalorder %s177, %s179
    %p186 = scmp.eq.s32.totalorder %s22, 1
    %p187 = por %p185, %p186
    %p188 = scmp.ne.s32.totalorder %s179, %s180
    %p189 = scmp.eq.s32.totalorder %s22, 0
    %p190 = por %p188, %p189
    %p191 = scmp.ne.s32.totalorder %s179, %s180
    %p192 = scmp.eq.s32.totalorder %s23, 1
    %p193 = por %p191, %p192
    %p195 = scmp.ne.s32.totalorder %s180, %s194
    %p196 = scmp.eq.s32.totalorder %s23, 0
    %p197 = por %p195, %p196
    %s199 = sadd.s32 %s198, 1
    %p202 = scmp.eq.s32.totalorder %s17, 1
    %p203 = scmp.ne.s32.totalorder %s198, %s200
    %p204 = scmp.eq.s32.totalorder %s17, 0
    %p205 = por %p203, %p204
    %p206 = scmp.ne.s32.totalorder %s198, %s200
    %p207 = scmp.eq.s32.totalorder %s22, 1
    %p208 = por %p206, %p207
    %p209 = scmp.ne.s32.totalorder %s200, %s201
    %p210 = scmp.eq.s32.totalorder %s22, 0
    %p211 = por %p209, %p210
    %p212 = scmp.ne.s32.totalorder %s200, %s201
    %p213 = scmp.eq.s32.totalorder %s23, 1
    %p214 = por %p212, %p213
    %p216 = scmp.ne.s32.totalorder %s201, %s215
    %p217 = scmp.eq.s32.totalorder %s23, 0
    %p218 = por %p216, %p217
    %s220 = sadd.s32 %s219, 1
    %p223 = scmp.eq.s32.totalorder %s17, 1
    %p224 = scmp.ne.s32.totalorder %s219, %s221
    %p225 = scmp.eq.s32.totalorder %s17, 0
    %p226 = por %p224, %p225
    %p227 = scmp.ne.s32.totalorder %s219, %s221
    %p228 = scmp.eq.s32.totalorder %s22, 1
    %p229 = por %p227, %p228
    %p230 = scmp.ne.s32.totalorder %s221, %s222
    %p231 = scmp.eq.s32.totalorder %s22, 0
    %p232 = por %p230, %p231
    %p233 = scmp.ne.s32.totalorder %s221, %s222
    %p234 = scmp.eq.s32.totalorder %s23, 1
    %p235 = por %p233, %p234
    %p237 = scmp.ne.s32.totalorder %s222, %s236
    %p238 = scmp.eq.s32.totalorder %s23, 0
    %p239 = por %p237, %p238
    %s241 = sadd.s32 %s240, 1
    %p244 = scmp.eq.s32.totalorder %s17, 1
    %p245 = scmp.ne.s32.totalorder %s240, %s242
    %p246 = scmp.eq.s32.totalorder %s17, 0
    %p247 = por %p245, %p246
    %p248 = scmp.ne.s32.totalorder %s240, %s242
    %p249 = scmp.eq.s32.totalorder %s22, 1
    %p250 = por %p248, %p249
    %p251 = scmp.ne.s32.totalorder %s242, %s243
    %p252 = scmp.eq.s32.totalorder %s22, 0
    %p253 = por %p251, %p252
    %p254 = scmp.ne.s32.totalorder %s242, %s243
    %p255 = scmp.eq.s32.totalorder %s23, 1
    %p256 = por %p254, %p255
    %p258 = scmp.ne.s32.totalorder %s243, %s257
    %p259 = scmp.eq.s32.totalorder %s23, 0
    %p260 = por %p258, %p259
    %s261 = ssub.s32 %s17, %s24
    %p262 = scmp.eq.s32.totalorder %s261, 0
    %s264 = sadd.s32 %s263, 1
    %s265 = scalar_select %p262, %s263, %s264
    %p268 = pneg %p262
    %p269 = scmp.eq.s32.totalorder %s17, 1
    %p270 = por %p268, %p269
    %p271 = scmp.ne.s32.totalorder %s263, %s266
    %p272 = scmp.eq.s32.totalorder %s17, 0
    %p273 = por %p271, %p272
    %p274 = scmp.ne.s32.totalorder %s263, %s266
    %p275 = scmp.eq.s32.totalorder %s22, 1
    %p276 = por %p274, %p275
    %p277 = scmp.ne.s32.totalorder %s266, %s267
    %p278 = scmp.eq.s32.totalorder %s22, 0
    %p279 = por %p277, %p278
    %p280 = scmp.ne.s32.totalorder %s266, %s267
    %p281 = scmp.eq.s32.totalorder %s23, 1
    %p282 = por %p280, %p281
    %p284 = scmp.ne.s32.totalorder %s267, %s283
    %p285 = scmp.eq.s32.totalorder %s23, 0
    %p286 = por %p284, %p285
    %p287 = scmp.le.s32.totalorder 1, %s17
    %p288 = scmp.lt.s32.totalorder %s17, 3
    %p289 = pnand %p287, %p288
    %p290 = pneg %p289
    // Predicated region
    $region9: #{bottleneck_forward.1} parent=5 // pred_check
      _
    $region10: #{bottleneck_forward.1} parent=5 // pred_check_branch
      %292 = sbr.rel (%p289) target = $region12
    $region11: #{bottleneck_forward.1} parent=5 // pred_region
      %s293 = ssub.s32 %s17, 1
      // Predicated region
      $region13: #{bottleneck_forward.1} parent=11 // pred_check
        %p294 = pneg %p64
      $region14: #{bottleneck_forward.1} parent=11 // pred_check_branch
        %296 = sbr.rel (%p294) target = $region16
      $region15: #{bottleneck_forward.1} parent=11 // pred_region
        _
      $region16: #{bottleneck_forward.1} parent=11 // pred_fallthru
        _
      // Predicated region
      $region17: #{bottleneck_forward.1} parent=11 // pred_check
        %p297 = pneg %p85
      $region18: #{bottleneck_forward.1} parent=11 // pred_check_branch
        %299 = sbr.rel (%p297) target = $region20
      $region19: #{bottleneck_forward.1} parent=11 // pred_region
        _
      $region20: #{bottleneck_forward.1} parent=11 // pred_fallthru
        _
      // Predicated region
      $region21: #{bottleneck_forward.1} parent=11 // pred_check
        %p300 = pneg %p106
      $region22: #{bottleneck_forward.1} parent=11 // pred_check_branch
        %302 = sbr.rel (%p300) target = $region24
      $region23: #{bottleneck_forward.1} parent=11 // pred_region
        _
      $region24: #{bottleneck_forward.1} parent=11 // pred_fallthru
        _
      // Predicated region
      $region25: #{bottleneck_forward.1} parent=11 // pred_check
        %p303 = pneg %p127
      $region26: #{bottleneck_forward.1} parent=11 // pred_check_branch
        %305 = sbr.rel (%p303) target = $region28
      $region27: #{bottleneck_forward.1} parent=11 // pred_region
        _
      $region28: #{bottleneck_forward.1} parent=11 // pred_fallthru
        _
      // Predicated region
      $region29: #{bottleneck_forward.1} parent=11 // pred_check
        %p306 = pneg %p148
      $region30: #{bottleneck_forward.1} parent=11 // pred_check_branch
        %308 = sbr.rel (%p306) target = $region32
      $region31: #{bottleneck_forward.1} parent=11 // pred_region
        _
      $region32: #{bottleneck_forward.1} parent=11 // pred_fallthru
        _
      // Predicated region
      $region33: #{bottleneck_forward.1} parent=11 // pred_check
        %p309 = pneg %p169
      $region34: #{bottleneck_forward.1} parent=11 // pred_check_branch
        %311 = sbr.rel (%p309) target = $region36
      $region35: #{bottleneck_forward.1} parent=11 // pred_region
        _
      $region36: #{bottleneck_forward.1} parent=11 // pred_fallthru
        _
      // Predicated region
      $region37: #{bottleneck_forward.1} parent=11 // pred_check
        %p312 = pneg %p190
      $region38: #{bottleneck_forward.1} parent=11 // pred_check_branch
        %314 = sbr.rel (%p312) target = $region40
      $region39: #{bottleneck_forward.1} parent=11 // pred_region
        _
      $region40: #{bottleneck_forward.1} parent=11 // pred_fallthru
        _
      // Predicated region
      $region41: #{bottleneck_forward.1} parent=11 // pred_check
        %p315 = pneg %p211
      $region42: #{bottleneck_forward.1} parent=11 // pred_check_branch
        %317 = sbr.rel (%p315) target = $region44
      $region43: #{bottleneck_forward.1} parent=11 // pred_region
        _
      $region44: #{bottleneck_forward.1} parent=11 // pred_fallthru
        _
      // Predicated region
      $region45: #{bottleneck_forward.1} parent=11 // pred_check
        %p318 = pneg %p232
      $region46: #{bottleneck_forward.1} parent=11 // pred_check_branch
        %320 = sbr.rel (%p318) target = $region48
      $region47: #{bottleneck_forward.1} parent=11 // pred_region
        _
      $region48: #{bottleneck_forward.1} parent=11 // pred_fallthru
        _
      // Predicated region
      $region49: #{bottleneck_forward.1} parent=11 // pred_check
        %p321 = pneg %p253
      $region50: #{bottleneck_forward.1} parent=11 // pred_check_branch
        %323 = sbr.rel (%p321) target = $region52
      $region51: #{bottleneck_forward.1} parent=11 // pred_region
        _
      $region52: #{bottleneck_forward.1} parent=11 // pred_fallthru
        _
    $region12: #{bottleneck_forward.1} parent=5 // pred_fallthru
      _
    %p324 = scmp.lt.s32.totalorder %s17, 2
    // Predicated region
    $region53: #{bottleneck_forward.1} parent=5 // pred_check
      %p325 = pneg %p324
    $region54: #{bottleneck_forward.1} parent=5 // pred_check_branch
      %327 = sbr.rel (%p325) target = $region56
    $region55: #{bottleneck_forward.1} parent=5 // pred_region
      // Predicated region
      $region57: #{bottleneck_forward.1} parent=55 // pred_check
        %p328 = pneg %p37
      $region58: #{bottleneck_forward.1} parent=55 // pred_check_branch
        %330 = sbr.rel (%p328) target = $region60
      $region59: #{bottleneck_forward.1} parent=55 // pred_region
        %p331 = scmp.lt.s32.totalorder %s17, 1
        %s332 = scalar_select %p331, %s17, 1
        %s333 = smul.addr %s332, 20
        %s334 = smul.addr %s333, 4
        %s335 = scalar_lea.vmem %s0, %s334
      $region60: #{bottleneck_forward.1} parent=55 // pred_fallthru
        _
    $region56: #{bottleneck_forward.1} parent=5 // pred_fallthru
      _
    %p336 = scmp.le.s32.totalorder 1, %s17
    %p337 = scmp.lt.s32.totalorder %s17, 3
    %p338 = pnand %p336, %p337
    %p339 = pneg %p338
    // Predicated region
    $region61: #{bottleneck_forward.1} parent=5 // pred_check
      _
    $region62: #{bottleneck_forward.1} parent=5 // pred_check_branch
      %341 = sbr.rel (%p338) target = $region64
    $region63: #{bottleneck_forward.1} parent=5 // pred_region
      %s342 = ssub.s32 %s17, 1
      %p343 = scmp.lt.s32.totalorder %s22, 1
      %s344 = scalar_select %p343, %s22, 1
      %s345 = smul.addr %s344, 20
      %s346 = smul.addr %s345, 4
      %s347 = scalar_lea.vmem %s0, %s346
      %p348 = pneg %p43
      %p349 = pneg %p40
      %p350 = pneg %p64
      %p351 = pneg %p61
      %p352 = pneg %p85
      %p353 = pneg %p82
      %p354 = pneg %p106
      %p355 = pneg %p103
      %p356 = pneg %p127
      %p357 = pneg %p124
      %p358 = pneg %p148
      %p359 = pneg %p145
      %p360 = pneg %p169
      %p361 = pneg %p166
      %p362 = pneg %p190
      %p363 = pneg %p187
      %p364 = pneg %p211
      %p365 = pneg %p208
      %p366 = pneg %p232
      %p367 = pneg %p229
      %p368 = pneg %p253
      %p369 = pneg %p250
      %p370 = pneg %p279
      %p371 = pneg %p276
      %p372 = scmp.lt.s32.totalorder %s22, 1
      %s373 = scalar_select %p372, %s22, 1
      %s374 = smul.addr %s373, 16
      %s375 = smul.addr %s374, 4
      %s376 = scalar_lea.vmem %s11, %s375
      %p377 = scmp.lt.s32.totalorder %s22, 1
      %s378 = scalar_select %p377, %s22, 1
      %s379 = smul.addr %s378, 20
      %s380 = smul.addr %s379, 4
      %s381 = scalar_lea.vmem %s0, %s380
      %p382 = scmp.lt.s32.totalorder %s22, 1
      %s383 = scalar_select %p382, %s22, 1
      %s384 = smul.addr %s383, 16
      %s385 = smul.addr %s384, 4
      %s386 = scalar_lea.vmem %s11, %s385
      %v388 = vld [vmem:[%s381] sm:$0xf]
      %v389 = vld [vmem:[%s381 + $0x4] sm:$0xf]
      %v390 = vld [vmem:[%s381 + $0x8] sm:$0xf]
      %v391 = vld [vmem:[%s381 + $0xc] sm:$0xf]
      %v392 = vld [vmem:[%s381 + $0x10] sm:$0xf]
      %v393 = vld [vmem:[%s381 + $0x14] sm:$0xf]
      %v394 = vld [vmem:[%s381 + $0x18] sm:$0xf]
      %v395 = vld [vmem:[%s381 + $0x1c] sm:$0xf]
      %v396 = vld [vmem:[%s381 + $0x20] sm:$0xf]
      %v397 = vld [vmem:[%s381 + $0x24] sm:$0xf]
      %v398 = vld [vmem:[%s381 + $0x28] sm:$0xf]
      %v399 = vld [vmem:[%s381 + $0x2c] sm:$0xf]
      %v400 = vld [vmem:[%s381 + $0x30] sm:$0xf]
      %v401 = vld [vmem:[%s381 + $0x34] sm:$0xf]
      %v402 = vld [vmem:[%s381 + $0x38] sm:$0xf]
      %v403 = vld [vmem:[%s381 + $0x3c] sm:$0xf]
      %v404 = vld [vmem:[%s381 + $0x40] sm:$0xf]
      %v405 = vld [vmem:[%s381 + $0x44] sm:$0xf]
      %v406 = vld [vmem:[%s381 + $0x48] sm:$0xf]
      %v407 = vld [vmem:[%s381 + $0x4c] sm:$0xf]
      %v408 = vld [vmem:[%s2] sm:$0xf]
      %v409 = vld [vmem:[%s2 + $0x4] sm:$0xf]
      %v410 = vld [vmem:[%s2 + $0x8] sm:$0xf]
      %v411 = vld [vmem:[%s2 + $0xc] sm:$0xf]
      %v412 = vld [vmem:[%s2 + $0x10] sm:$0xf]
      %v413 = vld [vmem:[%s2 + $0x14] sm:$0xf]
      %v414 = vld [vmem:[%s2 + $0x18] sm:$0xf]
      %v415 = vld [vmem:[%s2 + $0x1c] sm:$0xf]
      %v416 = vld [vmem:[%s2 + $0x20] sm:$0xf]
      %v417 = vld [vmem:[%s2 + $0x24] sm:$0xf]
      %v418 = vld [vmem:[%s2 + $0x28] sm:$0xf]
      %v419 = vld [vmem:[%s2 + $0x2c] sm:$0xf]
      %v420 = vld [vmem:[%s2 + $0x30] sm:$0xf]
      %v421 = vld [vmem:[%s2 + $0x34] sm:$0xf]
      %v422 = vld [vmem:[%s2 + $0x38] sm:$0xf]
      %v423 = vld [vmem:[%s2 + $0x3c] sm:$0xf]
      %v444 = vunpack.c.l.b16 %v388
      %v445 = vunpack.c.l.b16 %v389
      %v446 = vunpack.c.l.b16 %v390
      %v447 = vunpack.c.l.b16 %v391
      %v448 = vunpack.c.l.b16 %v392
      %v449 = vunpack.c.l.b16 %v393
      %v450 = vunpack.c.l.b16 %v394
      %v451 = vunpack.c.l.b16 %v395
      %v452 = vunpack.c.l.b16 %v396
      %v453 = vunpack.c.l.b16 %v397
      %v454 = vunpack.c.l.b16 %v398
      %v455 = vunpack.c.l.b16 %v399
      %v456 = vunpack.c.l.b16 %v400
      %v457 = vunpack.c.l.b16 %v401
      %v458 = vunpack.c.l.b16 %v402
      %v459 = vunpack.c.l.b16 %v403
      %v460 = vunpack.c.l.b16 %v404
      %v461 = vunpack.c.l.b16 %v405
      %v462 = vunpack.c.l.b16 %v406
      %v463 = vunpack.c.l.b16 %v407
      %v464 = vpack.c.b16 %v445, %v444
      %v465 = vpack.c.b16 %v447, %v446
      %v466 = vpack.c.b16 %v449, %v448
      %v467 = vpack.c.b16 %v451, %v450
      %v468 = vpack.c.b16 %v453, %v452
      %v469 = vpack.c.b16 %v455, %v454
      %v470 = vpack.c.b16 %v457, %v456
      %v471 = vpack.c.b16 %v459, %v458
      %v472 = vpack.c.b16 %v461, %v460
      %v473 = vpack.c.b16 %v463, %v462
      %v500 = vunpack.c.l.b16 %v408
      %v501 = vunpack.c.l.b16 %v409
      %v502 = vunpack.c.l.b16 %v410
      %v503 = vunpack.c.l.b16 %v411
      %v504 = vunpack.c.l.b16 %v412
      %v505 = vunpack.c.l.b16 %v413
      %v506 = vunpack.c.l.b16 %v414
      %v507 = vunpack.c.l.b16 %v415
      %v508 = vunpack.c.l.b16 %v416
      %v509 = vunpack.c.l.b16 %v417
      %v510 = vunpack.c.l.b16 %v418
      %v511 = vunpack.c.l.b16 %v419
      %v512 = vunpack.c.l.b16 %v420
      %v513 = vunpack.c.l.b16 %v421
      %v514 = vunpack.c.l.b16 %v422
      %v515 = vunpack.c.l.b16 %v423
      %v516 = vpack.c.b16 %v501, %v500
      %v517 = vpack.c.b16 %v503, %v502
      %v518 = vpack.c.b16 %v505, %v504
      %v519 = vpack.c.b16 %v507, %v506
      %v520 = vpack.c.b16 %v509, %v508
      %v521 = vpack.c.b16 %v511, %v510
      %v522 = vpack.c.b16 %v513, %v512
      %v523 = vpack.c.b16 %v515, %v514
      %532 = vmatprep.subr.bf16.mxu0 0
      %533 = vmatpush1.bf16.msra.mxu0 %v516
      %534 = vmatprep.subr.bf16.mxu0 0
      %535 = vmatpush1.bf16.msra.mxu0 %v517
      %536 = vmatprep.subr.bf16.mxu0 0
      %537 = vmatpush1.bf16.msra.mxu0 %v518
      %538 = vmatprep.subr.bf16.mxu0 0
      %539 = vmatpush1.bf16.msra.mxu0 %v519
      %540 = vmatprep.subr.bf16.mxu0 0
      %541 = vmatpush1.bf16.msra.mxu0 %v520
      %542 = vmatprep.subr.bf16.mxu0 0
      %543 = vmatpush1.bf16.msra.mxu0 %v521
      %544 = vmatprep.subr.bf16.mxu0 0
      %545 = vmatpush1.bf16.msra.mxu0 %v522
      %546 = vmatprep.subr.bf16.mxu0 0
      %547 = vmatpush1.bf16.msra.mxu0 %v523
      %548 = vmatprep.subr.bf16.mxu0 0
      %549 = vmatpush1.bf16.msra.mxu0 0
      %550 = vmatprep.subr.bf16.mxu0 0
      %551 = vmatpush1.bf16.msra.mxu0 0
      %552 = vmatprep.subr.bf16.mxu0 0
      %553 = vmatpush1.bf16.msra.mxu0 0
      %554 = vmatprep.subr.bf16.mxu0 0
      %555 = vmatpush1.bf16.msra.mxu0 0
      %556 = vmatprep.subr.bf16.mxu0 0
      %557 = vmatpush1.bf16.msra.mxu0 0
      %558 = vmatprep.subr.bf16.mxu0 0
      %559 = vmatpush1.bf16.msra.mxu0 0
      %560 = vmatprep.subr.bf16.mxu0 0
      %561 = vmatpush1.bf16.msra.mxu0 0
      %562 = vmatprep.subr.bf16.mxu0 0
      %563 = vmatpush1.bf16.msra.mxu0 0
      %564 = vmatprep.mubr.bf16.mxu0 0
      %565 = vmatmul.mubr.bf16.gmra.mrb[0].mxu0 %v464
      %v566 = vpop.f32.mrb[0].mxu0
      %v567 = vadd.f32 0.0, %v566
      %v568 = vpop.f32.mrb[0].mxu0
      %v569 = vpop.f32.mrb[0].mxu0
      %v570 = vadd.f32 0.0, %v569
      %v571 = vpop.f32.mrb[0].mxu0
      %572 = vmatprep.mubr.bf16.mxu0 0
      %573 = vmatmul.mubr.bf16.gmra.mrb[0].mxu0 %v465
      %v574 = vpop.f32.mrb[0].mxu0
      %v575 = vadd.f32 0.0, %v574
      %v576 = vpop.f32.mrb[0].mxu0
      %v577 = vpop.f32.mrb[0].mxu0
      %v578 = vadd.f32 0.0, %v577
      %v579 = vpop.f32.mrb[0].mxu0
      %580 = vmatprep.mubr.bf16.mxu0 0
      %581 = vmatmul.mubr.bf16.gmra.mrb[0].mxu0 %v466
      %v582 = vpop.f32.mrb[0].mxu0
      %v583 = vadd.f32 0.0, %v582
      %v584 = vpop.f32.mrb[0].mxu0
      %v585 = vpop.f32.mrb[0].mxu0
      %v586 = vadd.f32 0.0, %v585
      %v587 = vpop.f32.mrb[0].mxu0
      %588 = vmatprep.mubr.bf16.mxu0 0
      %589 = vmatmul.mubr.bf16.gmra.mrb[0].mxu0 %v467
      %v590 = vpop.f32.mrb[0].mxu0
      %v591 = vadd.f32 0.0, %v590
      %v592 = vpop.f32.mrb[0].mxu0
      %v593 = vpop.f32.mrb[0].mxu0
      %v594 = vadd.f32 0.0, %v593
      %v595 = vpop.f32.mrb[0].mxu0
      %596 = vmatprep.mubr.bf16.mxu0 0
      %597 = vmatmul.mubr.bf16.gmra.mrb[0].mxu0 %v468
      %v598 = vpop.f32.mrb[0].mxu0
      %v599 = vadd.f32 0.0, %v598
      %v600 = vpop.f32.mrb[0].mxu0
      %v601 = vpop.f32.mrb[0].mxu0
      %v602 = vadd.f32 0.0, %v601
      %v603 = vpop.f32.mrb[0].mxu0
      %604 = vmatprep.mubr.bf16.mxu0 0
      %605 = vmatmul.mubr.bf16.gmra.mrb[0].mxu0 %v469
      %v606 = vpop.f32.mrb[0].mxu0
      %v607 = vadd.f32 0.0, %v606
      %v608 = vpop.f32.mrb[0].mxu0
      %v609 = vpop.f32.mrb[0].mxu0
      %v610 = vadd.f32 0.0, %v609
      %v611 = vpop.f32.mrb[0].mxu0
      %612 = vmatprep.mubr.bf16.mxu0 0
      %613 = vmatmul.mubr.bf16.gmra.mrb[0].mxu0 %v470
      %v614 = vpop.f32.mrb[0].mxu0
      %v615 = vadd.f32 0.0, %v614
      %v616 = vpop.f32.mrb[0].mxu0
      %v617 = vpop.f32.mrb[0].mxu0
      %v618 = vadd.f32 0.0, %v617
      %v619 = vpop.f32.mrb[0].mxu0
      %620 = vmatprep.mubr.bf16.mxu0 0
      %621 = vmatmul.mubr.bf16.gmra.mrb[0].mxu0 %v471
      %v622 = vpop.f32.mrb[0].mxu0
      %v623 = vadd.f32 0.0, %v622
      %v624 = vpop.f32.mrb[0].mxu0
      %v625 = vpop.f32.mrb[0].mxu0
      %v626 = vadd.f32 0.0, %v625
      %v627 = vpop.f32.mrb[0].mxu0
      %628 = vmatprep.mubr.bf16.mxu0 0
      %629 = vmatmul.mubr.bf16.gmra.mrb[0].mxu0 %v472
      %v630 = vpop.f32.mrb[0].mxu0
      %v631 = vadd.f32 0.0, %v630
      %v632 = vpop.f32.mrb[0].mxu0
      %v633 = vpop.f32.mrb[0].mxu0
      %v634 = vadd.f32 0.0, %v633
      %v635 = vpop.f32.mrb[0].mxu0
      %636 = vmatprep.mubr.bf16.mxu0 0
      %637 = vmatmul.mubr.bf16.gmra.mrb[0].mxu0 %v473
      %v638 = vpop.f32.mrb[0].mxu0
      %v639 = vadd.f32 0.0, %v638
      %v640 = vpop.f32.mrb[0].mxu0
      %v641 = vpop.f32.mrb[0].mxu0
      %v642 = vadd.f32 0.0, %v641
      %v643 = vpop.f32.mrb[0].mxu0
      %644 = vdwg.mxu0
      %v645 = vld [vmem:[%s5] sm:$0x1]
      %v647 = vlaneseq
      %v648 = vshrl.u32 %v647, 7
      %v649 = vsub.s32 0, %v648
      %v650 = vrot.slane %v645, %v649
      %v652 = vmul.f32 %v567, %v650
      %v653 = vmul.f32 %v570, %v650
      %v654 = vmul.f32 %v575, %v650
      %v655 = vmul.f32 %v578, %v650
      %v656 = vmul.f32 %v583, %v650
      %v657 = vmul.f32 %v586, %v650
      %v658 = vmul.f32 %v591, %v650
      %v659 = vmul.f32 %v594, %v650
      %v660 = vmul.f32 %v599, %v650
      %v661 = vmul.f32 %v602, %v650
      %v662 = vmul.f32 %v607, %v650
      %v663 = vmul.f32 %v610, %v650
      %v664 = vmul.f32 %v615, %v650
      %v665 = vmul.f32 %v618, %v650
      %v666 = vmul.f32 %v623, %v650
      %v667 = vmul.f32 %v626, %v650
      %v668 = vmul.f32 %v631, %v650
      %v669 = vmul.f32 %v634, %v650
      %v670 = vmul.f32 %v639, %v650
      %v671 = vmul.f32 %v642, %v650
      %v672 = vld [vmem:[%s6] sm:$0x1]
      %v674 = vlaneseq
      %v675 = vshrl.u32 %v674, 7
      %v676 = vsub.s32 0, %v675
      %v677 = vrot.slane %v672, %v676
      %v679 = vadd.f32 %v652, %v677
      %v680 = vadd.f32 %v653, %v677
      %v681 = vadd.f32 %v654, %v677
      %v682 = vadd.f32 %v655, %v677
      %v683 = vadd.f32 %v656, %v677
      %v684 = vadd.f32 %v657, %v677
      %v685 = vadd.f32 %v658, %v677
      %v686 = vadd.f32 %v659, %v677
      %v687 = vadd.f32 %v660, %v677
      %v688 = vadd.f32 %v661, %v677
      %v689 = vadd.f32 %v662, %v677
      %v690 = vadd.f32 %v663, %v677
      %v691 = vadd.f32 %v664, %v677
      %v692 = vadd.f32 %v665, %v677
      %v693 = vadd.f32 %v666, %v677
      %v694 = vadd.f32 %v667, %v677
      %v695 = vadd.f32 %v668, %v677
      %v696 = vadd.f32 %v669, %v677
      %v697 = vadd.f32 %v670, %v677
      %v698 = vadd.f32 %v671, %v677
      %v699 = vmax.f32 %v679, 0.0
      %v700 = vmax.f32 %v680, 0.0
      %v701 = vmax.f32 %v681, 0.0
      %v702 = vmax.f32 %v682, 0.0
      %v703 = vmax.f32 %v683, 0.0
      %v704 = vmax.f32 %v684, 0.0
      %v705 = vmax.f32 %v685, 0.0
      %v706 = vmax.f32 %v686, 0.0
      %v707 = vmax.f32 %v687, 0.0
      %v708 = vmax.f32 %v688, 0.0
      %v709 = vmax.f32 %v689, 0.0
      %v710 = vmax.f32 %v690, 0.0
      %v711 = vmax.f32 %v691, 0.0
      %v712 = vmax.f32 %v692, 0.0
      %v713 = vmax.f32 %v693, 0.0
      %v714 = vmax.f32 %v694, 0.0
      %v715 = vmax.f32 %v695, 0.0
      %v716 = vmax.f32 %v696, 0.0
      %v717 = vmax.f32 %v697, 0.0
      %v718 = vmax.f32 %v698, 0.0
      %v719 = vld [vmem:[%s1] sm:$0xff]
      %v720 = vld [vmem:[%s1 + $0x8] sm:$0xff]
      %v721 = vld [vmem:[%s1 + $0x10] sm:$0xff]
      %v722 = vld [vmem:[%s1 + $0x18] sm:$0xff]
      %v723 = vld [vmem:[%s1 + $0x20] sm:$0xff]
      %v724 = vld [vmem:[%s1 + $0x28] sm:$0xff]
      %v725 = vld [vmem:[%s1 + $0x30] sm:$0xff]
      %v726 = vld [vmem:[%s1 + $0x38] sm:$0xff]
      %v727 = vld [vmem:[%s1 + $0x40] sm:$0xff]
      %v728 = vld [vmem:[%s1 + $0x48] sm:$0xff]
      %v729 = vld [vmem:[%s1 + $0x50] sm:$0xff]
      %v730 = vld [vmem:[%s1 + $0x58] sm:$0xff]
      %v731 = vld [vmem:[%s1 + $0x60] sm:$0xff]
      %v732 = vld [vmem:[%s1 + $0x68] sm:$0xff]
      %v733 = vld [vmem:[%s1 + $0x70] sm:$0xff]
      %v734 = vld [vmem:[%s1 + $0x78] sm:$0xff]
      %v735 = vld [vmem:[%s1 + $0x80] sm:$0xff]
      %v736 = vld [vmem:[%s1 + $0x88] sm:$0xff]
      %v737 = vld [vmem:[%s1 + $0x90] sm:$0xff]
      %v738 = vld [vmem:[%s1 + $0x98] sm:$0xff]
      %740 = vset.pattern.permute.xlu0 0
      %741 = vperm.xlu0 %740, %v719
      %v742 = vpop.permute.xlu0 %741
      %745 = vset.pattern.permute.xlu0 0
      %746 = vperm.xlu0 %745, %v720
      %v747 = vpop.permute.xlu0 %746
      %750 = vset.pattern.permute.xlu0 0
      %751 = vperm.xlu0 %750, %v721
      %v752 = vpop.permute.xlu0 %751
      %755 = vset.pattern.permute.xlu0 0
      %756 = vperm.xlu0 %755, %v722
      %v757 = vpop.permute.xlu0 %756
      %760 = vset.pattern.permute.xlu0 0
      %761 = vperm.xlu0 %760, %v723
      %v762 = vpop.permute.xlu0 %761
      %765 = vset.pattern.permute.xlu0 0
      %766 = vperm.xlu0 %765, %v724
      %v767 = vpop.permute.xlu0 %766
      %770 = vset.pattern.permute.xlu0 0
      %771 = vperm.xlu0 %770, %v725
      %v772 = vpop.permute.xlu0 %771
      %775 = vset.pattern.permute.xlu0 0
      %776 = vperm.xlu0 %775, %v726
      %v777 = vpop.permute.xlu0 %776
      %780 = vset.pattern.permute.xlu0 0
      %781 = vperm.xlu0 %780, %v727
      %v782 = vpop.permute.xlu0 %781
      %785 = vset.pattern.permute.xlu0 0
      %786 = vperm.xlu0 %785, %v728
      %v787 = vpop.permute.xlu0 %786
      %790 = vset.pattern.permute.xlu0 0
      %791 = vperm.xlu0 %790, %v729
      %v792 = vpop.permute.xlu0 %791
      %795 = vset.pattern.permute.xlu0 0
      %796 = vperm.xlu0 %795, %v730
      %v797 = vpop.permute.xlu0 %796
      %800 = vset.pattern.permute.xlu0 0
      %801 = vperm.xlu0 %800, %v731
      %v802 = vpop.permute.xlu0 %801
      %805 = vset.pattern.permute.xlu0 0
      %806 = vperm.xlu0 %805, %v732
      %v807 = vpop.permute.xlu0 %806
      %810 = vset.pattern.permute.xlu0 0
      %811 = vperm.xlu0 %810, %v733
      %v812 = vpop.permute.xlu0 %811
      %815 = vset.pattern.permute.xlu0 0
      %816 = vperm.xlu0 %815, %v734
      %v817 = vpop.permute.xlu0 %816
      %820 = vset.pattern.permute.xlu0 0
      %821 = vperm.xlu0 %820, %v735
      %v822 = vpop.permute.xlu0 %821
      %825 = vset.pattern.permute.xlu0 0
      %826 = vperm.xlu0 %825, %v736
      %v827 = vpop.permute.xlu0 %826
      %830 = vset.pattern.permute.xlu0 0
      %831 = vperm.xlu0 %830, %v737
      %v832 = vpop.permute.xlu0 %831
      %835 = vset.pattern.permute.xlu0 0
      %836 = vperm.xlu0 %835, %v738
      %v837 = vpop.permute.xlu0 %836
      %v839 = vmul.f32 %v699, %v742
      %v840 = vmul.f32 %v700, %v747
      %v841 = vmul.f32 %v701, %v752
      %v842 = vmul.f32 %v702, %v757
      %v843 = vmul.f32 %v703, %v762
      %v844 = vmul.f32 %v704, %v767
      %v845 = vmul.f32 %v705, %v772
      %v846 = vmul.f32 %v706, %v777
      %v847 = vmul.f32 %v707, %v782
      %v848 = vmul.f32 %v708, %v787
      %v849 = vmul.f32 %v709, %v792
      %v850 = vmul.f32 %v710, %v797
      %v851 = vmul.f32 %v711, %v802
      %v852 = vmul.f32 %v712, %v807
      %v853 = vmul.f32 %v713, %v812
      %v854 = vmul.f32 %v714, %v817
      %v855 = vmul.f32 %v715, %v822
      %v856 = vmul.f32 %v716, %v827
      %v857 = vmul.f32 %v717, %v832
      %v858 = vmul.f32 %v718, %v837
      %v859 = vpack.c.bf16 %v840, %v839
      %v860 = vpack.c.bf16 %v842, %v841
      %v861 = vpack.c.bf16 %v844, %v843
      %v862 = vpack.c.bf16 %v846, %v845
      %v863 = vpack.c.bf16 %v848, %v847
      %v864 = vpack.c.bf16 %v850, %v849
      %v865 = vpack.c.bf16 %v852, %v851
      %v866 = vpack.c.bf16 %v854, %v853
      %v867 = vpack.c.bf16 %v856, %v855
      %v868 = vpack.c.bf16 %v858, %v857
      %869 = vst [vmem:[#allocation2] sm:$0xff] %v859
      %870 = vst [vmem:[#allocation2 + $0x8] sm:$0xff] %v860
      %871 = vst [vmem:[#allocation2 + $0x10] sm:$0xff] %v861
      %872 = vst [vmem:[#allocation2 + $0x18] sm:$0xff] %v862
      %873 = vst [vmem:[#allocation2 + $0x20] sm:$0xff] %v863
      %874 = vst [vmem:[#allocation2 + $0x28] sm:$0xff] %v864
      %875 = vst [vmem:[#allocation2 + $0x30] sm:$0xff] %v865
      %876 = vst [vmem:[#allocation2 + $0x38] sm:$0xff] %v866
      %877 = vst [vmem:[#allocation2 + $0x40] sm:$0xff] %v867
      %878 = vst [vmem:[#allocation2 + $0x48] sm:$0xff] %v868
      %v879 = vld [vmem:[#allocation2] sm:$0xff]
      %v880 = vld [vmem:[#allocation2 + $0x8] sm:$0xff]
      %v881 = vld [vmem:[#allocation2 + $0x10] sm:$0xff]
      %v882 = vld [vmem:[#allocation2 + $0x18] sm:$0xff]
      %v883 = vld [vmem:[#allocation2 + $0x20] sm:$0xff]
      %v884 = vld [vmem:[#allocation2 + $0x28] sm:$0xff]
      %v885 = vld [vmem:[#allocation2 + $0x30] sm:$0xff]
      %v886 = vld [vmem:[#allocation2 + $0x38] sm:$0xff]
      %v887 = vld [vmem:[#allocation2 + $0x40] sm:$0xff]
      %v888 = vld [vmem:[#allocation2 + $0x10] sm:$0xff]
      %v889 = vld [vmem:[#allocation2 + $0x18] sm:$0xff]
      %v890 = vld [vmem:[#allocation2 + $0x20] sm:$0xff]
      %v891 = vld [vmem:[#allocation2 + $0x28] sm:$0xff]
      %v892 = vld [vmem:[#allocation2 + $0x30] sm:$0xff]
      %v893 = vld [vmem:[#allocation2 + $0x38] sm:$0xff]
      %v894 = vld [vmem:[#allocation2 + $0x40] sm:$0xff]
      %v895 = vld [vmem:[#allocation2 + $0x48] sm:$0xff]
      %v896 = vld [vmem:[%s3] sm:$0xf]
      %v897 = vld [vmem:[%s3 + $0x4] sm:$0xf]
      %v898 = vld [vmem:[%s3 + $0x8] sm:$0xf]
      %v899 = vld [vmem:[%s3 + $0xc] sm:$0xf]
      %v900 = vld [vmem:[%s3 + $0x10] sm:$0xf]
      %v901 = vld [vmem:[%s3 + $0x14] sm:$0xf]
      %v902 = vld [vmem:[%s3 + $0x18] sm:$0xf]
      %v903 = vld [vmem:[%s3 + $0x1c] sm:$0xf]
      %v904 = vld [vmem:[%s3 + $0x20] sm:$0xf]
      %v905 = vld [vmem:[%s3 + $0x24] sm:$0xf]
      %v906 = vld [vmem:[%s3 + $0x28] sm:$0xf]
      %v907 = vld [vmem:[%s3 + $0x2c] sm:$0xf]
      %v908 = vld [vmem:[%s3 + $0x30] sm:$0xf]
      %v909 = vld [vmem:[%s3 + $0x34] sm:$0xf]
      %v910 = vld [vmem:[%s3 + $0x38] sm:$0xf]
      %v911 = vld [vmem:[%s3 + $0x3c] sm:$0xf]
      %v912 = vld [vmem:[%s3 + $0x40] sm:$0xf]
      %v913 = vld [vmem:[%s3 + $0x44] sm:$0xf]
      %v914 = vld [vmem:[%s3 + $0x48] sm:$0xf]
      %v915 = vld [vmem:[%s3 + $0x4c] sm:$0xf]
      %v916 = vld [vmem:[%s3 + $0x50] sm:$0xf]
      %v917 = vld [vmem:[%s3 + $0x54] sm:$0xf]
      %v918 = vld [vmem:[%s3 + $0x58] sm:$0xf]
      %v919 = vld [vmem:[%s3 + $0x5c] sm:$0xf]
      %v920 = vld [vmem:[%s3 + $0x60] sm:$0xf]
      %v921 = vld [vmem:[%s3 + $0x64] sm:$0xf]
      %v922 = vld [vmem:[%s3 + $0x68] sm:$0xf]
      %v923 = vld [vmem:[%s3 + $0x6c] sm:$0xf]
      %v924 = vld [vmem:[%s3 + $0x70] sm:$0xf]
      %v925 = vld [vmem:[%s3 + $0x74] sm:$0xf]
      %v926 = vld [vmem:[%s3 + $0x78] sm:$0xf]
      %v927 = vld [vmem:[%s3 + $0x7c] sm:$0xf]
      %v928 = vld [vmem:[%s3 + $0x80] sm:$0xf]
      %v929 = vld [vmem:[%s3 + $0x84] sm:$0xf]
      %v930 = vld [vmem:[%s3 + $0x88] sm:$0xf]
      %v931 = vld [vmem:[%s3 + $0x8c] sm:$0xf]
      %v932 = vld [vmem:[%s3 + $0x90] sm:$0xf]
      %v933 = vld [vmem:[%s3 + $0x94] sm:$0xf]
      %v934 = vld [vmem:[%s3 + $0x98] sm:$0xf]
      %v935 = vld [vmem:[%s3 + $0x9c] sm:$0xf]
      %v936 = vld [vmem:[%s3 + $0xa0] sm:$0xf]
      %v937 = vld [vmem:[%s3 + $0xa4] sm:$0xf]
      %v938 = vld [vmem:[%s3 + $0xa8] sm:$0xf]
      %v939 = vld [vmem:[%s3 + $0xac] sm:$0xf]
      %v940 = vld [vmem:[%s3 + $0xb0] sm:$0xf]
      %v941 = vld [vmem:[%s3 + $0xb4] sm:$0xf]
      %v942 = vld [vmem:[%s3 + $0xb8] sm:$0xf]
      %v943 = vld [vmem:[%s3 + $0xbc] sm:$0xf]
      %s944 = scalar_lea.vmem %s3, 192
      %v945 = vld [vmem:[%s944] sm:$0xf]
      %v946 = vld [vmem:[%s944 + $0x4] sm:$0xf]
      %v947 = vld [vmem:[%s944 + $0x8] sm:$0xf]
      %v948 = vld [vmem:[%s944 + $0xc] sm:$0xf]
      %v949 = vld [vmem:[%s944 + $0x10] sm:$0xf]
      %v950 = vld [vmem:[%s944 + $0x14] sm:$0xf]
      %v951 = vld [vmem:[%s944 + $0x18] sm:$0xf]
      %v952 = vld [vmem:[%s944 + $0x1c] sm:$0xf]
      %v953 = vld [vmem:[%s944 + $0x20] sm:$0xf]
      %v954 = vld [vmem:[%s944 + $0x24] sm:$0xf]
      %v955 = vld [vmem:[%s944 + $0x28] sm:$0xf]
      %v956 = vld [vmem:[%s944 + $0x2c] sm:$0xf]
      %v957 = vld [vmem:[%s944 + $0x30] sm:$0xf]
      %v958 = vld [vmem:[%s944 + $0x34] sm:$0xf]
      %v959 = vld [vmem:[%s944 + $0x38] sm:$0xf]
      %v960 = vld [vmem:[%s944 + $0x3c] sm:$0xf]
      %v961 = vld [vmem:[%s944 + $0x40] sm:$0xf]
      %v962 = vld [vmem:[%s944 + $0x44] sm:$0xf]
      %v963 = vld [vmem:[%s944 + $0x48] sm:$0xf]
      %v964 = vld [vmem:[%s944 + $0x4c] sm:$0xf]
      %v965 = vld [vmem:[%s944 + $0x50] sm:$0xf]
      %v966 = vld [vmem:[%s944 + $0x54] sm:$0xf]
      %v967 = vld [vmem:[%s944 + $0x58] sm:$0xf]
      %v968 = vld [vmem:[%s944 + $0x5c] sm:$0xf]
      %v969 = vld [vmem:[%s944 + $0x60] sm:$0xf]
      %v970 = vld [vmem:[%s944 + $0x64] sm:$0xf]
      %v971 = vld [vmem:[%s944 + $0x68] sm:$0xf]
      %v972 = vld [vmem:[%s944 + $0x6c] sm:$0xf]
      %v973 = vld [vmem:[%s944 + $0x70] sm:$0xf]
      %v974 = vld [vmem:[%s944 + $0x74] sm:$0xf]
      %v975 = vld [vmem:[%s944 + $0x78] sm:$0xf]
      %v976 = vld [vmem:[%s944 + $0x7c] sm:$0xf]
      %v977 = vld [vmem:[%s944 + $0x80] sm:$0xf]
      %v978 = vld [vmem:[%s944 + $0x84] sm:$0xf]
      %v979 = vld [vmem:[%s944 + $0x88] sm:$0xf]
      %v980 = vld [vmem:[%s944 + $0x8c] sm:$0xf]
      %v981 = vld [vmem:[%s944 + $0x90] sm:$0xf]
      %v982 = vld [vmem:[%s944 + $0x94] sm:$0xf]
      %v983 = vld [vmem:[%s944 + $0x98] sm:$0xf]
      %v984 = vld [vmem:[%s944 + $0x9c] sm:$0xf]
      %v985 = vld [vmem:[%s944 + $0xa0] sm:$0xf]
      %v986 = vld [vmem:[%s944 + $0xa4] sm:$0xf]
      %v987 = vld [vmem:[%s944 + $0xa8] sm:$0xf]
      %v988 = vld [vmem:[%s944 + $0xac] sm:$0xf]
      %v989 = vld [vmem:[%s944 + $0xb0] sm:$0xf]
      %v990 = vld [vmem:[%s944 + $0xb4] sm:$0xf]
      %v991 = vld [vmem:[%s944 + $0xb8] sm:$0xf]
      %v992 = vld [vmem:[%s944 + $0xbc] sm:$0xf]
      %v1041 = vunpack.c.l.b16 %v945
      %v1042 = vunpack.c.l.b16 %v946
      %v1043 = vunpack.c.l.b16 %v947
      %v1044 = vunpack.c.l.b16 %v948
      %v1045 = vunpack.c.l.b16 %v949
      %v1046 = vunpack.c.l.b16 %v950
      %v1047 = vunpack.c.l.b16 %v951
      %v1048 = vunpack.c.l.b16 %v952
      %v1049 = vunpack.c.l.b16 %v953
      %v1050 = vunpack.c.l.b16 %v954
      %v1051 = vunpack.c.l.b16 %v955
      %v1052 = vunpack.c.l.b16 %v956
      %v1053 = vunpack.c.l.b16 %v957
      %v1054 = vunpack.c.l.b16 %v958
      %v1055 = vunpack.c.l.b16 %v959
      %v1056 = vunpack.c.l.b16 %v960
      %v1057 = vunpack.c.l.b16 %v961
      %v1058 = vunpack.c.l.b16 %v962
      %v1059 = vunpack.c.l.b16 %v963
      %v1060 = vunpack.c.l.b16 %v964
      %v1061 = vunpack.c.l.b16 %v965
      %v1062 = vunpack.c.l.b16 %v966
      %v1063 = vunpack.c.l.b16 %v967
      %v1064 = vunpack.c.l.b16 %v968
      %v1065 = vunpack.c.l.b16 %v969
      %v1066 = vunpack.c.l.b16 %v970
      %v1067 = vunpack.c.l.b16 %v971
      %v1068 = vunpack.c.l.b16 %v972
      %v1069 = vunpack.c.l.b16 %v973
      %v1070 = vunpack.c.l.b16 %v974
      %v1071 = vunpack.c.l.b16 %v975
      %v1072 = vunpack.c.l.b16 %v976
      %v1073 = vunpack.c.l.b16 %v977
      %v1074 = vunpack.c.l.b16 %v978
      %v1075 = vunpack.c.l.b16 %v979
      %v1076 = vunpack.c.l.b16 %v980
      %v1077 = vunpack.c.l.b16 %v981
      %v1078 = vunpack.c.l.b16 %v982
      %v1079 = vunpack.c.l.b16 %v983
      %v1080 = vunpack.c.l.b16 %v984
      %v1081 = vunpack.c.l.b16 %v985
      %v1082 = vunpack.c.l.b16 %v986
      %v1083 = vunpack.c.l.b16 %v987
      %v1084 = vunpack.c.l.b16 %v988
      %v1085 = vunpack.c.l.b16 %v989
      %v1086 = vunpack.c.l.b16 %v990
      %v1087 = vunpack.c.l.b16 %v991
      %v1088 = vunpack.c.l.b16 %v992
      %v1089 = vpack.c.b16 %v1042, %v1041
      %v1090 = vpack.c.b16 %v1044, %v1043
      %v1091 = vpack.c.b16 %v1046, %v1045
      %v1092 = vpack.c.b16 %v1048, %v1047
      %v1093 = vpack.c.b16 %v1050, %v1049
      %v1094 = vpack.c.b16 %v1052, %v1051
      %v1095 = vpack.c.b16 %v1054, %v1053
      %v1096 = vpack.c.b16 %v1056, %v1055
      %v1097 = vpack.c.b16 %v1058, %v1057
      %v1098 = vpack.c.b16 %v1060, %v1059
      %v1099 = vpack.c.b16 %v1062, %v1061
      %v1100 = vpack.c.b16 %v1064, %v1063
      %v1101 = vpack.c.b16 %v1066, %v1065
      %v1102 = vpack.c.b16 %v1068, %v1067
      %v1103 = vpack.c.b16 %v1070, %v1069
      %v1104 = vpack.c.b16 %v1072, %v1071
      %v1105 = vpack.c.b16 %v1074, %v1073
      %v1106 = vpack.c.b16 %v1076, %v1075
      %v1107 = vpack.c.b16 %v1078, %v1077
      %v1108 = vpack.c.b16 %v1080, %v1079
      %v1109 = vpack.c.b16 %v1082, %v1081
      %v1110 = vpack.c.b16 %v1084, %v1083
      %v1111 = vpack.c.b16 %v1086, %v1085
      %v1112 = vpack.c.b16 %v1088, %v1087
      %1137 = vmatprep.subr.bf16.mxu0 0
      %1138 = vmatpush1.bf16.msra.mxu0 %v1089
      %1139 = vmatprep.subr.bf16.mxu0 0
      %1140 = vmatpush1.bf16.msra.mxu0 %v1090
      %1141 = vmatprep.subr.bf16.mxu0 0
      %1142 = vmatpush1.bf16.msra.mxu0 %v1091
      %1143 = vmatprep.subr.bf16.mxu0 0
      %1144 = vmatpush1.bf16.msra.mxu0 %v1092
      %1145 = vmatprep.subr.bf16.mxu0 0
      %1146 = vmatpush1.bf16.msra.mxu0 %v1093
      %1147 = vmatprep.subr.bf16.mxu0 0
      %1148 = vmatpush1.bf16.msra.mxu0 %v1094
      %1149 = vmatprep.subr.bf16.mxu0 0
      %1150 = vmatpush1.bf16.msra.mxu0 %v1095
      %1151 = vmatprep.subr.bf16.mxu0 0
      %1152 = vmatpush1.bf16.msra.mxu0 %v1096
      %1153 = vmatprep.subr.bf16.mxu0 0
      %1154 = vmatpush1.bf16.msra.mxu0 %v1097
      %1155 = vmatprep.subr.bf16.mxu0 0
      %1156 = vmatpush1.bf16.msra.mxu0 %v1098
      %1157 = vmatprep.subr.bf16.mxu0 0
      %1158 = vmatpush1.bf16.msra.mxu0 %v1099
      %1159 = vmatprep.subr.bf16.mxu0 0
      %1160 = vmatpush1.bf16.msra.mxu0 %v1100
      %1161 = vmatprep.subr.bf16.mxu0 0
      %1162 = vmatpush1.bf16.msra.mxu0 %v1101
      %1163 = vmatprep.subr.bf16.mxu0 0
      %1164 = vmatpush1.bf16.msra.mxu0 %v1102
      %1165 = vmatprep.subr.bf16.mxu0 0
      %1166 = vmatpush1.bf16.msra.mxu0 %v1103
      %1167 = vmatprep.subr.bf16.mxu0 0
      %1168 = vmatpush1.bf16.msra.mxu0 %v1104
      %1169 = vmatprep.mubr.bf16.mxu0 %v880
      %1170 = vmatmul.mubr.bf16.gmra.mrb[0].mxu0 %v879
      %v1171 = vpop.f32.mrb[0].mxu0
      %v1172 = vadd.f32 0.0, %v1171
      %v1173 = vpop.f32.mrb[0].mxu0
      %v1174 = vpop.f32.mrb[0].mxu0
      %v1175 = vadd.f32 0.0, %v1174
      %v1176 = vpop.f32.mrb[0].mxu0
      %1177 = vmatprep.mubr.bf16.mxu0 %v881
      %1178 = vmatmul.mubr.bf16.gmra.mrb[0].mxu0 %v880
      %v1179 = vpop.f32.mrb[0].mxu0
      %v1180 = vadd.f32 0.0, %v1179
      %v1181 = vpop.f32.mrb[0].mxu0
      %v1182 = vpop.f32.mrb[0].mxu0
      %v1183 = vadd.f32 0.0, %v1182
      %v1184 = vpop.f32.mrb[0].mxu0
      %1185 = vmatprep.mubr.bf16.mxu0 %v882
      %1186 = vmatmul.mubr.bf16.gmra.mrb[0].mxu0 %v881
      %v1187 = vpop.f32.mrb[0].mxu0
      %v1188 = vadd.f32 0.0, %v1187
      %v1189 = vpop.f32.mrb[0].mxu0
      %v1190 = vpop.f32.mrb[0].mxu0
      %v1191 = vadd.f32 0.0, %v1190
      %v1192 = vpop.f32.mrb[0].mxu0
      %1193 = vmatprep.mubr.bf16.mxu0 %v883
      %1194 = vmatmul.mubr.bf16.gmra.mrb[0].mxu0 %v882
      %v1195 = vpop.f32.mrb[0].mxu0
      %v1196 = vadd.f32 0.0, %v1195
      %v1197 = vpop.f32.mrb[0].mxu0
      %v1198 = vpop.f32.mrb[0].mxu0
      %v1199 = vadd.f32 0.0, %v1198
      %v1200 = vpop.f32.mrb[0].mxu0
      %1201 = vmatprep.mubr.bf16.mxu0 %v884
      %1202 = vmatmul.mubr.bf16.gmra.mrb[0].mxu0 %v883
      %v1203 = vpop.f32.mrb[0].mxu0
      %v1204 = vadd.f32 0.0, %v1203
      %v1205 = vpop.f32.mrb[0].mxu0
      %v1206 = vpop.f32.mrb[0].mxu0
      %v1207 = vadd.f32 0.0, %v1206
      %v1208 = vpop.f32.mrb[0].mxu0
      %1209 = vmatprep.mubr.bf16.mxu0 %v885
      %1210 = vmatmul.mubr.bf16.gmra.mrb[0].mxu0 %v884
      %v1211 = vpop.f32.mrb[0].mxu0
      %v1212 = vadd.f32 0.0, %v1211
      %v1213 = vpop.f32.mrb[0].mxu0
      %v1214 = vpop.f32.mrb[0].mxu0
      %v1215 = vadd.f32 0.0, %v1214
      %v1216 = vpop.f32.mrb[0].mxu0
      %1217 = vmatprep.mubr.bf16.mxu0 %v886
      %1218 = vmatmul.mubr.bf16.gmra.mrb[0].mxu0 %v885
      %v1219 = vpop.f32.mrb[0].mxu0
      %v1220 = vadd.f32 0.0, %v1219
      %v1221 = vpop.f32.mrb[0].mxu0
      %v1222 = vpop.f32.mrb[0].mxu0
      %v1223 = vadd.f32 0.0, %v1222
      %v1224 = vpop.f32.mrb[0].mxu0
      %1225 = vmatprep.mubr.bf16.mxu0 %v887
      %1226 = vmatmul.mubr.bf16.gmra.mrb[0].mxu0 %v886
      %v1227 = vpop.f32.mrb[0].mxu0
      %v1228 = vadd.f32 0.0, %v1227
      %v1229 = vpop.f32.mrb[0].mxu0
      %v1230 = vpop.f32.mrb[0].mxu0
      %v1231 = vadd.f32 0.0, %v1230
      %v1232 = vpop.f32.mrb[0].mxu0
      %1233 = vdwg.mxu0
      %1234 = vmatprep.subr.bf16.mxu0 0
      %1235 = vmatpush1.bf16.msra.mxu0 %v1105
      %1236 = vmatprep.subr.bf16.mxu0 0
      %1237 = vmatpush1.bf16.msra.mxu0 %v1106
      %1238 = vmatprep.subr.bf16.mxu0 0
      %1239 = vmatpush1.bf16.msra.mxu0 %v1107
      %1240 = vmatprep.subr.bf16.mxu0 0
      %1241 = vmatpush1.bf16.msra.mxu0 %v1108
      %1242 = vmatprep.subr.bf16.mxu0 0
      %1243 = vmatpush1.bf16.msra.mxu0 %v1109
      %1244 = vmatprep.subr.bf16.mxu0 0
      %1245 = vmatpush1.bf16.msra.mxu0 %v1110
      %1246 = vmatprep.subr.bf16.mxu0 0
      %1247 = vmatpush1.bf16.msra.mxu0 %v1111
      %1248 = vmatprep.subr.bf16.mxu0 0
      %1249 = vmatpush1.bf16.msra.mxu0 %v1112
      %1250 = vmatprep.subr.bf16.mxu0 0
      %1251 = vmatpush1.bf16.msra.mxu0 0
      %1252 = vmatprep.subr.bf16.mxu0 0
      %1253 = vmatpush1.bf16.msra.mxu0 0
      %1254 = vmatprep.subr.bf16.mxu0 0
      %1255 = vmatpush1.bf16.msra.mxu0 0
      %1256 = vmatprep.subr.bf16.mxu0 0
      %1257 = vmatpush1.bf16.msra.mxu0 0
      %1258 = vmatprep.subr.bf16.mxu0 0
      %1259 = vmatpush1.bf16.msra.mxu0 0
      %1260 = vmatprep.subr.bf16.mxu0 0
      %1261 = vmatpush1.bf16.msra.mxu0 0
      %1262 = vmatprep.subr.bf16.mxu0 0
      %1263 = vmatpush1.bf16.msra.mxu0 0
      %1264 = vmatprep.subr.bf16.mxu0 0
      %1265 = vmatpush1.bf16.msra.mxu0 0
      %1266 = vmatprep.mubr.bf16.mxu0 0
      %1267 = vmatmul.mubr.bf16.gmra.mrb[0].mxu0 %v888
      %v1268 = vpop.f32.mrb[0].mxu0
      %v1269 = vadd.f32 %v1172, %v1268
      %v1270 = vpop.f32.mrb[0].mxu0
      %v1271 = vpop.f32.mrb[0].mxu0
      %v1272 = vadd.f32 %v1175, %v1271
      %v1273 = vpop.f32.mrb[0].mxu0
      %1274 = vmatprep.mubr.bf16.mxu0 0
      %1275 = vmatmul.mubr.bf16.gmra.mrb[0].mxu0 %v889
      %v1276 = vpop.f32.mrb[0].mxu0
      %v1277 = vadd.f32 %v1180, %v1276
      %v1278 = vpop.f32.mrb[0].mxu0
      %v1279 = vpop.f32.mrb[0].mxu0
      %v1280 = vadd.f32 %v1183, %v1279
      %v1281 = vpop.f32.mrb[0].mxu0
      %1282 = vmatprep.mubr.bf16.mxu0 0
      %1283 = vmatmul.mubr.bf16.gmra.mrb[0].mxu0 %v890
      %v1284 = vpop.f32.mrb[0].mxu0
      %v1285 = vadd.f32 %v1188, %v1284
      %v1286 = vpop.f32.mrb[0].mxu0
      %v1287 = vpop.f32.mrb[0].mxu0
      %v1288 = vadd.f32 %v1191, %v1287
      %v1289 = vpop.f32.mrb[0].mxu0
      %1290 = vmatprep.mubr.bf16.mxu0 0
      %1291 = vmatmul.mubr.bf16.gmra.mrb[0].mxu0 %v891
      %v1292 = vpop.f32.mrb[0].mxu0
      %v1293 = vadd.f32 %v1196, %v1292
      %v1294 = vpop.f32.mrb[0].mxu0
      %v1295 = vpop.f32.mrb[0].mxu0
      %v1296 = vadd.f32 %v1199, %v1295
      %v1297 = vpop.f32.mrb[0].mxu0
      %1298 = vmatprep.mubr.bf16.mxu0 0
      %1299 = vmatmul.mubr.bf16.gmra.mrb[0].mxu0 %v892
      %v1300 = vpop.f32.mrb[0].mxu0
      %v1301 = vadd.f32 %v1204, %v1300
      %v1302 = vpop.f32.mrb[0].mxu0
      %v1303 = vpop.f32.mrb[0].mxu0
      %v1304 = vadd.f32 %v1207, %v1303
      %v1305 = vpop.f32.mrb[0].mxu0
      %1306 = vmatprep.mubr.bf16.mxu0 0
      %1307 = vmatmul.mubr.bf16.gmra.mrb[0].mxu0 %v893
      %v1308 = vpop.f32.mrb[0].mxu0
      %v1309 = vadd.f32 %v1212, %v1308
      %v1310 = vpop.f32.mrb[0].mxu0
      %v1311 = vpop.f32.mrb[0].mxu0
      %v1312 = vadd.f32 %v1215, %v1311
      %v1313 = vpop.f32.mrb[0].mxu0
      %1314 = vmatprep.mubr.bf16.mxu0 0
      %1315 = vmatmul.mubr.bf16.gmra.mrb[0].mxu0 %v894
      %v1316 = vpop.f32.mrb[0].mxu0
      %v1317 = vadd.f32 %v1220, %v1316
      %v1318 = vpop.f32.mrb[0].mxu0
      %v1319 = vpop.f32.mrb[0].mxu0
      %v1320 = vadd.f32 %v1223, %v1319
      %v1321 = vpop.f32.mrb[0].mxu0
      %1322 = vmatprep.mubr.bf16.mxu0 0
      %1323 = vmatmul.mubr.bf16.gmra.mrb[0].mxu0 %v895
      %v1324 = vpop.f32.mrb[0].mxu0
      %v1325 = vadd.f32 %v1228, %v1324
      %v1326 = vpop.f32.mrb[0].mxu0
      %v1327 = vpop.f32.mrb[0].mxu0
      %v1328 = vadd.f32 %v1231, %v1327
      %v1329 = vpop.f32.mrb[0].mxu0
      %1330 = vdwg.mxu0
      %vm1347 = vcmask 1046528
      %v1348 = vrot.slane %v1269, 1
      %v1349 = vrot.slane %v1272, 1
      %v1350 = vsel %vm1347, %v1348, %v1349
      %v1351 = vrot.slane %v1277, 1
      %v1352 = vsel %vm1347, %v1349, %v1351
      %v1353 = vrot.slane %v1280, 1
      %v1354 = vsel %vm1347, %v1351, %v1353
      %v1355 = vrot.slane %v1285, 1
      %v1356 = vsel %vm1347, %v1353, %v1355
      %v1357 = vrot.slane %v1288, 1
      %v1358 = vsel %vm1347, %v1355, %v1357
      %v1359 = vrot.slane %v1293, 1
      %v1360 = vsel %vm1347, %v1357, %v1359
      %v1361 = vrot.slane %v1296, 1
      %v1362 = vsel %vm1347, %v1359, %v1361
      %v1363 = vrot.slane %v1301, 1
      %v1364 = vsel %vm1347, %v1361, %v1363
      %v1365 = vrot.slane %v1304, 1
      %v1366 = vsel %vm1347, %v1363, %v1365
      %v1367 = vrot.slane %v1309, 1
      %v1368 = vsel %vm1347, %v1365, %v1367
      %v1369 = vrot.slane %v1312, 1
      %v1370 = vsel %vm1347, %v1367, %v1369
      %v1371 = vrot.slane %v1317, 1
      %v1372 = vsel %vm1347, %v1369, %v1371
      %v1373 = vrot.slane %v1320, 1
      %v1374 = vsel %vm1347, %v1371, %v1373
      %v1375 = vrot.slane %v1325, 1
      %v1376 = vsel %vm1347, %v1373, %v1375
      %v1377 = vrot.slane %v1328, 1
      %v1378 = vsel %vm1347, %v1375, %v1377
      %v1395 = vsel %vm1347, %v1377, 0.0
      %v1444 = vunpack.c.l.b16 %v896
      %v1445 = vunpack.c.l.b16 %v897
      %v1446 = vunpack.c.l.b16 %v898
      %v1447 = vunpack.c.l.b16 %v899
      %v1448 = vunpack.c.l.b16 %v900
      %v1449 = vunpack.c.l.b16 %v901
      %v1450 = vunpack.c.l.b16 %v902
      %v1451 = vunpack.c.l.b16 %v903
      %v1452 = vunpack.c.l.b16 %v904
      %v1453 = vunpack.c.l.b16 %v905
      %v1454 = vunpack.c.l.b16 %v906
      %v1455 = vunpack.c.l.b16 %v907
      %v1456 = vunpack.c.l.b16 %v908
      %v1457 = vunpack.c.l.b16 %v909
      %v1458 = vunpack.c.l.b16 %v910
      %v1459 = vunpack.c.l.b16 %v911
      %v1460 = vunpack.c.l.b16 %v912
      %v1461 = vunpack.c.l.b16 %v913
      %v1462 = vunpack.c.l.b16 %v914
      %v1463 = vunpack.c.l.b16 %v915
      %v1464 = vunpack.c.l.b16 %v916
      %v1465 = vunpack.c.l.b16 %v917
      %v1466 = vunpack.c.l.b16 %v918
      %v1467 = vunpack.c.l.b16 %v919
      %v1468 = vunpack.c.l.b16 %v920
      %v1469 = vunpack.c.l.b16 %v921
      %v1470 = vunpack.c.l.b16 %v922
      %v1471 = vunpack.c.l.b16 %v923
      %v1472 = vunpack.c.l.b16 %v924
      %v1473 = vunpack.c.l.b16 %v925
      %v1474 = vunpack.c.l.b16 %v926
      %v1475 = vunpack.c.l.b16 %v927
      %v1476 = vunpack.c.l.b16 %v928
      %v1477 = vunpack.c.l.b16 %v929
      %v1478 = vunpack.c.l.b16 %v930
      %v1479 = vunpack.c.l.b16 %v931
      %v1480 = vunpack.c.l.b16 %v932
      %v1481 = vunpack.c.l.b16 %v933
      %v1482 = vunpack.c.l.b16 %v934
      %v1483 = vunpack.c.l.b16 %v935
      %v1484 = vunpack.c.l.b16 %v936
      %v1485 = vunpack.c.l.b16 %v937
      %v1486 = vunpack.c.l.b16 %v938
      %v1487 = vunpack.c.l.b16 %v939
      %v1488 = vunpack.c.l.b16 %v940
      %v1489 = vunpack.c.l.b16 %v941
      %v1490 = vunpack.c.l.b16 %v942
      %v1491 = vunpack.c.l.b16 %v943
      %v1492 = vpack.c.b16 %v1445, %v1444
      %v1493 = vpack.c.b16 %v1447, %v1446
      %v1494 = vpack.c.b16 %v1449, %v1448
      %v1495 = vpack.c.b16 %v1451, %v1450
      %v1496 = vpack.c.b16 %v1453, %v1452
      %v1497 = vpack.c.b16 %v1455, %v1454
      %v1498 = vpack.c.b16 %v1457, %v1456
      %v1499 = vpack.c.b16 %v1459, %v1458
      %v1500 = vpack.c.b16 %v1461, %v1460
      %v1501 = vpack.c.b16 %v1463, %v1462
      %v1502 = vpack.c.b16 %v1465, %v1464
      %v1503 = vpack.c.b16 %v1467, %v1466
      %v1504 = vpack.c.b16 %v1469, %v1468
      %v1505 = vpack.c.b16 %v1471, %v1470
      %v1506 = vpack.c.b16 %v1473, %v1472
      %v1507 = vpack.c.b16 %v1475, %v1474
      %v1508 = vpack.c.b16 %v1477, %v1476
      %v1509 = vpack.c.b16 %v1479, %v1478
      %v1510 = vpack.c.b16 %v1481, %v1480
      %v1511 = vpack.c.b16 %v1483, %v1482
      %v1512 = vpack.c.b16 %v1485, %v1484
      %v1513 = vpack.c.b16 %v1487, %v1486
      %v1514 = vpack.c.b16 %v1489, %v1488
      %v1515 = vpack.c.b16 %v1491, %v1490
      %1540 = vmatprep.subr.bf16.mxu0 0
      %1541 = vmatpush1.bf16.msra.mxu0 %v1492
      %1542 = vmatprep.subr.bf16.mxu0 0
      %1543 = vmatpush1.bf16.msra.mxu0 %v1493
      %1544 = vmatprep.subr.bf16.mxu0 0
      %1545 = vmatpush1.bf16.msra.mxu0 %v1494
      %1546 = vmatprep.subr.bf16.mxu0 0
      %1547 = vmatpush1.bf16.msra.mxu0 %v1495
      %1548 = vmatprep.subr.bf16.mxu0 0
      %1549 = vmatpush1.bf16.msra.mxu0 %v1496
      %1550 = vmatprep.subr.bf16.mxu0 0
      %1551 = vmatpush1.bf16.msra.mxu0 %v1497
      %1552 = vmatprep.subr.bf16.mxu0 0
      %1553 = vmatpush1.bf16.msra.mxu0 %v1498
      %1554 = vmatprep.subr.bf16.mxu0 0
      %1555 = vmatpush1.bf16.msra.mxu0 %v1499
      %1556 = vmatprep.subr.bf16.mxu0 0
      %1557 = vmatpush1.bf16.msra.mxu0 %v1500
      %1558 = vmatprep.subr.bf16.mxu0 0
      %1559 = vmatpush1.bf16.msra.mxu0 %v1501
      %1560 = vmatprep.subr.bf16.mxu0 0
      %1561 = vmatpush1.bf16.msra.mxu0 %v1502
      %1562 = vmatprep.subr.bf16.mxu0 0
      %1563 = vmatpush1.bf16.msra.mxu0 %v1503
      %1564 = vmatprep.subr.bf16.mxu0 0
      %1565 = vmatpush1.bf16.msra.mxu0 %v1504
      %1566 = vmatprep.subr.bf16.mxu0 0
      %1567 = vmatpush1.bf16.msra.mxu0 %v1505
      %1568 = vmatprep.subr.bf16.mxu0 0
      %1569 = vmatpush1.bf16.msra.mxu0 %v1506
      %1570 = vmatprep.subr.bf16.mxu0 0
      %1571 = vmatpush1.bf16.msra.mxu0 %v1507
      %1572 = vmatprep.mubr.bf16.mxu0 %v880
      %1573 = vmatmul.mubr.bf16.gmra.mrb[0].mxu0 %v879
      %v1574 = vpop.f32.mrb[0].mxu0
      %v1575 = vadd.f32 %v1350, %v1574
      %v1576 = vpop.f32.mrb[0].mxu0
      %v1577 = vpop.f32.mrb[0].mxu0
      %v1578 = vadd.f32 %v1352, %v1577
      %v1579 = vpop.f32.mrb[0].mxu0
      %1580 = vmatprep.mubr.bf16.mxu0 %v881
      %1581 = vmatmul.mubr.bf16.gmra.mrb[0].mxu0 %v880
      %v1582 = vpop.f32.mrb[0].mxu0
      %v1583 = vadd.f32 %v1354, %v1582
      %v1584 = vpop.f32.mrb[0].mxu0
      %v1585 = vpop.f32.mrb[0].mxu0
      %v1586 = vadd.f32 %v1356, %v1585
      %v1587 = vpop.f32.mrb[0].mxu0
      %1588 = vmatprep.mubr.bf16.mxu0 %v882
      %1589 = vmatmul.mubr.bf16.gmra.mrb[0].mxu0 %v881
      %v1590 = vpop.f32.mrb[0].mxu0
      %v1591 = vadd.f32 %v1358, %v1590
      %v1592 = vpop.f32.mrb[0].mxu0
      %v1593 = vpop.f32.mrb[0].mxu0
      %v1594 = vadd.f32 %v1360, %v1593
      %v1595 = vpop.f32.mrb[0].mxu0
      %1596 = vmatprep.mubr.bf16.mxu0 %v883
      %1597 = vmatmul.mubr.bf16.gmra.mrb[0].mxu0 %v882
      %v1598 = vpop.f32.mrb[0].mxu0
      %v1599 = vadd.f32 %v1362, %v1598
      %v1600 = vpop.f32.mrb[0].mxu0
      %v1601 = vpop.f32.mrb[0].mxu0
      %v1602 = vadd.f32 %v1364, %v1601
      %v1603 = vpop.f32.mrb[0].mxu0
      %1604 = vmatprep.mubr.bf16.mxu0 %v884
      %1605 = vmatmul.mubr.bf16.gmra.mrb[0].mxu0 %v883
      %v1606 = vpop.f32.mrb[0].mxu0
      %v1607 = vadd.f32 %v1366, %v1606
      %v1608 = vpop.f32.mrb[0].mxu0
      %v1609 = vpop.f32.mrb[0].mxu0
      %v1610 = vadd.f32 %v1368, %v1609
      %v1611 = vpop.f32.mrb[0].mxu0
      %1612 = vmatprep.mubr.bf16.mxu0 %v885
      %1613 = vmatmul.mubr.bf16.gmra.mrb[0].mxu0 %v884
      %v1614 = vpop.f32.mrb[0].mxu0
      %v1615 = vadd.f32 %v1370, %v1614
      %v1616 = vpop.f32.mrb[0].mxu0
      %v1617 = vpop.f32.mrb[0].mxu0
      %v1618 = vadd.f32 %v1372, %v1617
      %v1619 = vpop.f32.mrb[0].mxu0
      %1620 = vmatprep.mubr.bf16.mxu0 %v886
      %1621 = vmatmul.mubr.bf16.gmra.mrb[0].mxu0 %v885
      %v1622 = vpop.f32.mrb[0].mxu0
      %v1623 = vadd.f32 %v1374, %v1622
      %v1624 = vpop.f32.mrb[0].mxu0
      %v1625 = vpop.f32.mrb[0].mxu0
      %v1626 = vadd.f32 %v1376, %v1625
      %v1627 = vpop.f32.mrb[0].mxu0
      %1628 = vmatprep.mubr.bf16.mxu0 %v887
      %1629 = vmatmul.mubr.bf16.gmra.mrb[0].mxu0 %v886
      %v1630 = vpop.f32.mrb[0].mxu0
      %v1631 = vadd.f32 %v1378, %v1630
      %v1632 = vpop.f32.mrb[0].mxu0
      %v1633 = vpop.f32.mrb[0].mxu0
      %v1634 = vadd.f32 %v1395, %v1633
      %v1635 = vpop.f32.mrb[0].mxu0
      %1636 = vdwg.mxu0
      %1637 = vmatprep.subr.bf16.mxu0 0
      %1638 = vmatpush1.bf16.msra.mxu0 %v1508
      %1639 = vmatprep.subr.bf16.mxu0 0
      %1640 = vmatpush1.bf16.msra.mxu0 %v1509
      %1641 = vmatprep.subr.bf16.mxu0 0
      %1642 = vmatpush1.bf16.msra.mxu0 %v1510
      %1643 = vmatprep.subr.bf16.mxu0 0
      %1644 = vmatpush1.bf16.msra.mxu0 %v1511
      %1645 = vmatprep.subr.bf16.mxu0 0
      %1646 = vmatpush1.bf16.msra.mxu0 %v1512
      %1647 = vmatprep.subr.bf16.mxu0 0
      %1648 = vmatpush1.bf16.msra.mxu0 %v1513
      %1649 = vmatprep.subr.bf16.mxu0 0
      %1650 = vmatpush1.bf16.msra.mxu0 %v1514
      %1651 = vmatprep.subr.bf16.mxu0 0
      %1652 = vmatpush1.bf16.msra.mxu0 %v1515
      %1653 = vmatprep.subr.bf16.mxu0 0
      %1654 = vmatpush1.bf16.msra.mxu0 0
      %1655 = vmatprep.subr.bf16.mxu0 0
      %1656 = vmatpush1.bf16.msra.mxu0 0
      %1657 = vmatprep.subr.bf16.mxu0 0
      %1658 = vmatpush1.bf16.msra.mxu0 0
      %1659 = vmatprep.subr.bf16.mxu0 0
      %1660 = vmatpush1.bf16.msra.mxu0 0
      %1661 = vmatprep.subr.bf16.mxu0 0
      %1662 = vmatpush1.bf16.msra.mxu0 0
      %1663 = vmatprep.subr.bf16.mxu0 0
      %1664 = vmatpush1.bf16.msra.mxu0 0
      %1665 = vmatprep.subr.bf16.mxu0 0
      %1666 = vmatpush1.bf16.msra.mxu0 0
      %1667 = vmatprep.subr.bf16.mxu0 0
      %1668 = vmatpush1.bf16.msra.mxu0 0
      %1669 = vmatprep.mubr.bf16.mxu0 0
      %1670 = vmatmul.mubr.bf16.gmra.mrb[0].mxu0 %v888
      %v1671 = vpop.f32.mrb[0].mxu0
      %v1672 = vadd.f32 %v1575, %v1671
      %v1673 = vpop.f32.mrb[0].mxu0
      %v1674 = vpop.f32.mrb[0].mxu0
      %v1675 = vadd.f32 %v1578, %v1674
      %v1676 = vpop.f32.mrb[0].mxu0
      %1677 = vmatprep.mubr.bf16.mxu0 0
      %1678 = vmatmul.mubr.bf16.gmra.mrb[0].mxu0 %v889
      %v1679 = vpop.f32.mrb[0].mxu0
      %v1680 = vadd.f32 %v1583, %v1679
      %v1681 = vpop.f32.mrb[0].mxu0
      %v1682 = vpop.f32.mrb[0].mxu0
      %v1683 = vadd.f32 %v1586, %v1682
      %v1684 = vpop.f32.mrb[0].mxu0
      %1685 = vmatprep.mubr.bf16.mxu0 0
      %1686 = vmatmul.mubr.bf16.gmra.mrb[0].mxu0 %v890
      %v1687 = vpop.f32.mrb[0].mxu0
      %v1688 = vadd.f32 %v1591, %v1687
      %v1689 = vpop.f32.mrb[0].mxu0
      %v1690 = vpop.f32.mrb[0].mxu0
      %v1691 = vadd.f32 %v1594, %v1690
      %v1692 = vpop.f32.mrb[0].mxu0
      %1693 = vmatprep.mubr.bf16.mxu0 0
      %1694 = vmatmul.mubr.bf16.gmra.mrb[0].mxu0 %v891
      %v1695 = vpop.f32.mrb[0].mxu0
      %v1696 = vadd.f32 %v1599, %v1695
      %v1697 = vpop.f32.mrb[0].mxu0
      %v1698 = vpop.f32.mrb[0].mxu0
      %v1699 = vadd.f32 %v1602, %v1698
      %v1700 = vpop.f32.mrb[0].mxu0
      %1701 = vmatprep.mubr.bf16.mxu0 0
      %1702 = vmatmul.mubr.bf16.gmra.mrb[0].mxu0 %v892
      %v1703 = vpop.f32.mrb[0].mxu0
      %v1704 = vadd.f32 %v1607, %v1703
      %v1705 = vpop.f32.mrb[0].mxu0
      %v1706 = vpop.f32.mrb[0].mxu0
      %v1707 = vadd.f32 %v1610, %v1706
      %v1708 = vpop.f32.mrb[0].mxu0
      %1709 = vmatprep.mubr.bf16.mxu0 0
      %1710 = vmatmul.mubr.bf16.gmra.mrb[0].mxu0 %v893
      %v1711 = vpop.f32.mrb[0].mxu0
      %v1712 = vadd.f32 %v1615, %v1711
      %v1713 = vpop.f32.mrb[0].mxu0
      %v1714 = vpop.f32.mrb[0].mxu0
      %v1715 = vadd.f32 %v1618, %v1714
      %v1716 = vpop.f32.mrb[0].mxu0
      %1717 = vmatprep.mubr.bf16.mxu0 0
      %1718 = vmatmul.mubr.bf16.gmra.mrb[0].mxu0 %v894
      %v1719 = vpop.f32.mrb[0].mxu0
      %v1720 = vadd.f32 %v1623, %v1719
      %v1721 = vpop.f32.mrb[0].mxu0
      %v1722 = vpop.f32.mrb[0].mxu0
      %v1723 = vadd.f32 %v1626, %v1722
      %v1724 = vpop.f32.mrb[0].mxu0
      %1725 = vmatprep.mubr.bf16.mxu0 0
      %1726 = vmatmul.mubr.bf16.gmra.mrb[0].mxu0 %v895
      %v1727 = vpop.f32.mrb[0].mxu0
      %v1728 = vadd.f32 %v1631, %v1727
      %v1729 = vpop.f32.mrb[0].mxu0
      %v1730 = vpop.f32.mrb[0].mxu0
      %v1731 = vadd.f32 %v1634, %v1730
      %v1732 = vpop.f32.mrb[0].mxu0
      %1733 = vdwg.mxu0
      %s1734 = scalar_lea.vmem %s3, 384
      %v1735 = vld [vmem:[%s1734] sm:$0xf]
      %v1736 = vld [vmem:[%s1734 + $0x4] sm:$0xf]
      %v1737 = vld [vmem:[%s1734 + $0x8] sm:$0xf]
      %v1738 = vld [vmem:[%s1734 + $0xc] sm:$0xf]
      %v1739 = vld [vmem:[%s1734 + $0x10] sm:$0xf]
      %v1740 = vld [vmem:[%s1734 + $0x14] sm:$0xf]
      %v1741 = vld [vmem:[%s1734 + $0x18] sm:$0xf]
      %v1742 = vld [vmem:[%s1734 + $0x1c] sm:$0xf]
      %v1743 = vld [vmem:[%s1734 + $0x20] sm:$0xf]
      %v1744 = vld [vmem:[%s1734 + $0x24] sm:$0xf]
      %v1745 = vld [vmem:[%s1734 + $0x28] sm:$0xf]
      %v1746 = vld [vmem:[%s1734 + $0x2c] sm:$0xf]
      %v1747 = vld [vmem:[%s1734 + $0x30] sm:$0xf]
      %v1748 = vld [vmem:[%s1734 + $0x34] sm:$0xf]
      %v1749 = vld [vmem:[%s1734 + $0x38] sm:$0xf]
      %v1750 = vld [vmem:[%s1734 + $0x3c] sm:$0xf]
      %v1751 = vld [vmem:[%s1734 + $0x40] sm:$0xf]
      %v1752 = vld [vmem:[%s1734 + $0x44] sm:$0xf]
      %v1753 = vld [vmem:[%s1734 + $0x48] sm:$0xf]
      %v1754 = vld [vmem:[%s1734 + $0x4c] sm:$0xf]
      %v1755 = vld [vmem:[%s1734 + $0x50] sm:$0xf]
      %v1756 = vld [vmem:[%s1734 + $0x54] sm:$0xf]
      %v1757 = vld [vmem:[%s1734 + $0x58] sm:$0xf]
      %v1758 = vld [vmem:[%s1734 + $0x5c] sm:$0xf]
      %v1759 = vld [vmem:[%s1734 + $0x60] sm:$0xf]
      %v1760 = vld [vmem:[%s1734 + $0x64] sm:$0xf]
      %v1761 = vld [vmem:[%s1734 + $0x68] sm:$0xf]
      %v1762 = vld [vmem:[%s1734 + $0x6c] sm:$0xf]
      %v1763 = vld [vmem:[%s1734 + $0x70] sm:$0xf]
      %v1764 = vld [vmem:[%s1734 + $0x74] sm:$0xf]
      %v1765 = vld [vmem:[%s1734 + $0x78] sm:$0xf]
      %v1766 = vld [vmem:[%s1734 + $0x7c] sm:$0xf]
      %v1767 = vld [vmem:[%s1734 + $0x80] sm:$0xf]
      %v1768 = vld [vmem:[%s1734 + $0x84] sm:$0xf]
      %v1769 = vld [vmem:[%s1734 + $0x88] sm:$0xf]
      %v1770 = vld [vmem:[%s1734 + $0x8c] sm:$0xf]
      %v1771 = vld [vmem:[%s1734 + $0x90] sm:$0xf]
      %v1772 = vld [vmem:[%s1734 + $0x94] sm:$0xf]
      %v1773 = vld [vmem:[%s1734 + $0x98] sm:$0xf]
      %v1774 = vld [vmem:[%s1734 + $0x9c] sm:$0xf]
      %v1775 = vld [vmem:[%s1734 + $0xa0] sm:$0xf]
      %v1776 = vld [vmem:[%s1734 + $0xa4] sm:$0xf]
      %v1777 = vld [vmem:[%s1734 + $0xa8] sm:$0xf]
      %v1778 = vld [vmem:[%s1734 + $0xac] sm:$0xf]
      %v1779 = vld [vmem:[%s1734 + $0xb0] sm:$0xf]
      %v1780 = vld [vmem:[%s1734 + $0xb4] sm:$0xf]
      %v1781 = vld [vmem:[%s1734 + $0xb8] sm:$0xf]
      %v1782 = vld [vmem:[%s1734 + $0xbc] sm:$0xf]
      %v1831 = vunpack.c.l.b16 %v1735
      %v1832 = vunpack.c.l.b16 %v1736
      %v1833 = vunpack.c.l.b16 %v1737
      %v1834 = vunpack.c.l.b16 %v1738
      %v1835 = vunpack.c.l.b16 %v1739
      %v1836 = vunpack.c.l.b16 %v1740
      %v1837 = vunpack.c.l.b16 %v1741
      %v1838 = vunpack.c.l.b16 %v1742
      %v1839 = vunpack.c.l.b16 %v1743
      %v1840 = vunpack.c.l.b16 %v1744
      %v1841 = vunpack.c.l.b16 %v1745
      %v1842 = vunpack.c.l.b16 %v1746
      %v1843 = vunpack.c.l.b16 %v1747
      %v1844 = vunpack.c.l.b16 %v1748
      %v1845 = vunpack.c.l.b16 %v1749
      %v1846 = vunpack.c.l.b16 %v1750
      %v1847 = vunpack.c.l.b16 %v1751
      %v1848 = vunpack.c.l.b16 %v1752
      %v1849 = vunpack.c.l.b16 %v1753
      %v1850 = vunpack.c.l.b16 %v1754
      %v1851 = vunpack.c.l.b16 %v1755
      %v1852 = vunpack.c.l.b16 %v1756
      %v1853 = vunpack.c.l.b16 %v1757
      %v1854 = vunpack.c.l.b16 %v1758
      %v1855 = vunpack.c.l.b16 %v1759
      %v1856 = vunpack.c.l.b16 %v1760
      %v1857 = vunpack.c.l.b16 %v1761
      %v1858 = vunpack.c.l.b16 %v1762
      %v1859 = vunpack.c.l.b16 %v1763
      %v1860 = vunpack.c.l.b16 %v1764
      %v1861 = vunpack.c.l.b16 %v1765
      %v1862 = vunpack.c.l.b16 %v1766
      %v1863 = vunpack.c.l.b16 %v1767
      %v1864 = vunpack.c.l.b16 %v1768
      %v1865 = vunpack.c.l.b16 %v1769
      %v1866 = vunpack.c.l.b16 %v1770
      %v1867 = vunpack.c.l.b16 %v1771
      %v1868 = vunpack.c.l.b16 %v1772
      %v1869 = vunpack.c.l.b16 %v1773
      %v1870 = vunpack.c.l.b16 %v1774
      %v1871 = vunpack.c.l.b16 %v1775
      %v1872 = vunpack.c.l.b16 %v1776
      %v1873 = vunpack.c.l.b16 %v1777
      %v1874 = vunpack.c.l.b16 %v1778
      %v1875 = vunpack.c.l.b16 %v1779
      %v1876 = vunpack.c.l.b16 %v1780
      %v1877 = vunpack.c.l.b16 %v1781
      %v1878 = vunpack.c.l.b16 %v1782
      %v1879 = vpack.c.b16 %v1832, %v1831
      %v1880 = vpack.c.b16 %v1834, %v1833
      %v1881 = vpack.c.b16 %v1836, %v1835
      %v1882 = vpack.c.b16 %v1838, %v1837
      %v1883 = vpack.c.b16 %v1840, %v1839
      %v1884 = vpack.c.b16 %v1842, %v1841
      %v1885 = vpack.c.b16 %v1844, %v1843
      %v1886 = vpack.c.b16 %v1846, %v1845
      %v1887 = vpack.c.b16 %v1848, %v1847
      %v1888 = vpack.c.b16 %v1850, %v1849
      %v1889 = vpack.c.b16 %v1852, %v1851
      %v1890 = vpack.c.b16 %v1854, %v1853
      %v1891 = vpack.c.b16 %v1856, %v1855
      %v1892 = vpack.c.b16 %v1858, %v1857
      %v1893 = vpack.c.b16 %v1860, %v1859
      %v1894 = vpack.c.b16 %v1862, %v1861
      %v1895 = vpack.c.b16 %v1864, %v1863
      %v1896 = vpack.c.b16 %v1866, %v1865
      %v1897 = vpack.c.b16 %v1868, %v1867
      %v1898 = vpack.c.b16 %v1870, %v1869
      %v1899 = vpack.c.b16 %v1872, %v1871
      %v1900 = vpack.c.b16 %v1874, %v1873
      %v1901 = vpack.c.b16 %v1876, %v1875
      %v1902 = vpack.c.b16 %v1878, %v1877
      %1927 = vmatprep.subr.bf16.mxu0 0
      %1928 = vmatpush1.bf16.msra.mxu0 %v1879
      %1929 = vmatprep.subr.bf16.mxu0 0
      %1930 = vmatpush1.bf16.msra.mxu0 %v1880
      %1931 = vmatprep.subr.bf16.mxu0 0
      %1932 = vmatpush1.bf16.msra.mxu0 %v1881
      %1933 = vmatprep.subr.bf16.mxu0 0
      %1934 = vmatpush1.bf16.msra.mxu0 %v1882
      %1935 = vmatprep.subr.bf16.mxu0 0
      %1936 = vmatpush1.bf16.msra.mxu0 %v1883
      %1937 = vmatprep.subr.bf16.mxu0 0
      %1938 = vmatpush1.bf16.msra.mxu0 %v1884
      %1939 = vmatprep.subr.bf16.mxu0 0
      %1940 = vmatpush1.bf16.msra.mxu0 %v1885
      %1941 = vmatprep.subr.bf16.mxu0 0
      %1942 = vmatpush1.bf16.msra.mxu0 %v1886
      %1943 = vmatprep.subr.bf16.mxu0 0
      %1944 = vmatpush1.bf16.msra.mxu0 %v1887
      %1945 = vmatprep.subr.bf16.mxu0 0
      %1946 = vmatpush1.bf16.msra.mxu0 %v1888
      %1947 = vmatprep.subr.bf16.mxu0 0
      %1948 = vmatpush1.bf16.msra.mxu0 %v1889
      %1949 = vmatprep.subr.bf16.mxu0 0
      %1950 = vmatpush1.bf16.msra.mxu0 %v1890
      %1951 = vmatprep.subr.bf16.mxu0 0
      %1952 = vmatpush1.bf16.msra.mxu0 %v1891
      %1953 = vmatprep.subr.bf16.mxu0 0
      %1954 = vmatpush1.bf16.msra.mxu0 %v1892
      %1955 = vmatprep.subr.bf16.mxu0 0
      %1956 = vmatpush1.bf16.msra.mxu0 %v1893
      %1957 = vmatprep.subr.bf16.mxu0 0
      %1958 = vmatpush1.bf16.msra.mxu0 %v1894
      %1959 = vmatprep.mubr.bf16.mxu0 %v880
      %1960 = vmatmul.mubr.bf16.gmra.mrb[0].mxu0 %v879
      %v1961 = vpop.f32.mrb[0].mxu0
      %v1962 = vadd.f32 0.0, %v1961
      %v1963 = vpop.f32.mrb[0].mxu0
      %v1964 = vpop.f32.mrb[0].mxu0
      %v1965 = vadd.f32 0.0, %v1964
      %v1966 = vpop.f32.mrb[0].mxu0
      %1967 = vmatprep.mubr.bf16.mxu0 %v881
      %1968 = vmatmul.mubr.bf16.gmra.mrb[0].mxu0 %v880
      %v1969 = vpop.f32.mrb[0].mxu0
      %v1970 = vadd.f32 0.0, %v1969
      %v1971 = vpop.f32.mrb[0].mxu0
      %v1972 = vpop.f32.mrb[0].mxu0
      %v1973 = vadd.f32 0.0, %v1972
      %v1974 = vpop.f32.mrb[0].mxu0
      %1975 = vmatprep.mubr.bf16.mxu0 %v882
      %1976 = vmatmul.mubr.bf16.gmra.mrb[0].mxu0 %v881
      %v1977 = vpop.f32.mrb[0].mxu0
      %v1978 = vadd.f32 0.0, %v1977
      %v1979 = vpop.f32.mrb[0].mxu0
      %v1980 = vpop.f32.mrb[0].mxu0
      %v1981 = vadd.f32 0.0, %v1980
      %v1982 = vpop.f32.mrb[0].mxu0
      %1983 = vmatprep.mubr.bf16.mxu0 %v883
      %1984 = vmatmul.mubr.bf16.gmra.mrb[0].mxu0 %v882
      %v1985 = vpop.f32.mrb[0].mxu0
      %v1986 = vadd.f32 0.0, %v1985
      %v1987 = vpop.f32.mrb[0].mxu0
      %v1988 = vpop.f32.mrb[0].mxu0
      %v1989 = vadd.f32 0.0, %v1988
      %v1990 = vpop.f32.mrb[0].mxu0
      %1991 = vmatprep.mubr.bf16.mxu0 %v884
      %1992 = vmatmul.mubr.bf16.gmra.mrb[0].mxu0 %v883
      %v1993 = vpop.f32.mrb[0].mxu0
      %v1994 = vadd.f32 0.0, %v1993
      %v1995 = vpop.f32.mrb[0].mxu0
      %v1996 = vpop.f32.mrb[0].mxu0
      %v1997 = vadd.f32 0.0, %v1996
      %v1998 = vpop.f32.mrb[0].mxu0
      %1999 = vmatprep.mubr.bf16.mxu0 %v885
      %2000 = vmatmul.mubr.bf16.gmra.mrb[0].mxu0 %v884
      %v2001 = vpop.f32.mrb[0].mxu0
      %v2002 = vadd.f32 0.0, %v2001
      %v2003 = vpop.f32.mrb[0].mxu0
      %v2004 = vpop.f32.mrb[0].mxu0
      %v2005 = vadd.f32 0.0, %v2004
      %v2006 = vpop.f32.mrb[0].mxu0
      %2007 = vmatprep.mubr.bf16.mxu0 %v886
      %2008 = vmatmul.mubr.bf16.gmra.mrb[0].mxu0 %v885
      %v2009 = vpop.f32.mrb[0].mxu0
      %v2010 = vadd.f32 0.0, %v2009
      %v2011 = vpop.f32.mrb[0].mxu0
      %v2012 = vpop.f32.mrb[0].mxu0
      %v2013 = vadd.f32 0.0, %v2012
      %v2014 = vpop.f32.mrb[0].mxu0
      %2015 = vmatprep.mubr.bf16.mxu0 %v887
      %2016 = vmatmul.mubr.bf16.gmra.mrb[0].mxu0 %v886
      %v2017 = vpop.f32.mrb[0].mxu0
      %v2018 = vadd.f32 0.0, %v2017
      %v2019 = vpop.f32.mrb[0].mxu0
      %v2020 = vpop.f32.mrb[0].mxu0
      %v2021 = vadd.f32 0.0, %v2020
      %v2022 = vpop.f32.mrb[0].mxu0
      %2023 = vdwg.mxu0
      %2024 = vmatprep.subr.bf16.mxu0 0
      %2025 = vmatpush1.bf16.msra.mxu0 %v1895
      %2026 = vmatprep.subr.bf16.mxu0 0
      %2027 = vmatpush1.bf16.msra.mxu0 %v1896
      %2028 = vmatprep.subr.bf16.mxu0 0
      %2029 = vmatpush1.bf16.msra.mxu0 %v1897
      %2030 = vmatprep.subr.bf16.mxu0 0
      %2031 = vmatpush1.bf16.msra.mxu0 %v1898
      %2032 = vmatprep.subr.bf16.mxu0 0
      %2033 = vmatpush1.bf16.msra.mxu0 %v1899
      %2034 = vmatprep.subr.bf16.mxu0 0
      %2035 = vmatpush1.bf16.msra.mxu0 %v1900
      %2036 = vmatprep.subr.bf16.mxu0 0
      %2037 = vmatpush1.bf16.msra.mxu0 %v1901
      %2038 = vmatprep.subr.bf16.mxu0 0
      %2039 = vmatpush1.bf16.msra.mxu0 %v1902
      %2040 = vmatprep.subr.bf16.mxu0 0
      %2041 = vmatpush1.bf16.msra.mxu0 0
      %2042 = vmatprep.subr.bf16.mxu0 0
      %2043 = vmatpush1.bf16.msra.mxu0 0
      %2044 = vmatprep.subr.bf16.mxu0 0
      %2045 = vmatpush1.bf16.msra.mxu0 0
      %2046 = vmatprep.subr.bf16.mxu0 0
      %2047 = vmatpush1.bf16.msra.mxu0 0
      %2048 = vmatprep.subr.bf16.mxu0 0
      %2049 = vmatpush1.bf16.msra.mxu0 0
      %2050 = vmatprep.subr.bf16.mxu0 0
      %2051 = vmatpush1.bf16.msra.mxu0 0
      %2052 = vmatprep.subr.bf16.mxu0 0
      %2053 = vmatpush1.bf16.msra.mxu0 0
      %2054 = vmatprep.subr.bf16.mxu0 0
      %2055 = vmatpush1.bf16.msra.mxu0 0
      %2056 = vmatprep.mubr.bf16.mxu0 0
      %2057 = vmatmul.mubr.bf16.gmra.mrb[0].mxu0 %v888
      %v2058 = vpop.f32.mrb[0].mxu0
      %v2059 = vadd.f32 %v1962, %v2058
      %v2060 = vpop.f32.mrb[0].mxu0
      %v2061 = vpop.f32.mrb[0].mxu0
      %v2062 = vadd.f32 %v1965, %v2061
      %v2063 = vpop.f32.mrb[0].mxu0
      %2064 = vmatprep.mubr.bf16.mxu0 0
      %2065 = vmatmul.mubr.bf16.gmra.mrb[0].mxu0 %v889
      %v2066 = vpop.f32.mrb[0].mxu0
      %v2067 = vadd.f32 %v1970, %v2066
      %v2068 = vpop.f32.mrb[0].mxu0
      %v2069 = vpop.f32.mrb[0].mxu0
      %v2070 = vadd.f32 %v1973, %v2069
      %v2071 = vpop.f32.mrb[0].mxu0
      %2072 = vmatprep.mubr.bf16.mxu0 0
      %2073 = vmatmul.mubr.bf16.gmra.mrb[0].mxu0 %v890
      %v2074 = vpop.f32.mrb[0].mxu0
      %v2075 = vadd.f32 %v1978, %v2074
      %v2076 = vpop.f32.mrb[0].mxu0
      %v2077 = vpop.f32.mrb[0].mxu0
      %v2078 = vadd.f32 %v1981, %v2077
      %v2079 = vpop.f32.mrb[0].mxu0
      %2080 = vmatprep.mubr.bf16.mxu0 0
      %2081 = vmatmul.mubr.bf16.gmra.mrb[0].mxu0 %v891
      %v2082 = vpop.f32.mrb[0].mxu0
      %v2083 = vadd.f32 %v1986, %v2082
      %v2084 = vpop.f32.mrb[0].mxu0
      %v2085 = vpop.f32.mrb[0].mxu0
      %v2086 = vadd.f32 %v1989, %v2085
      %v2087 = vpop.f32.mrb[0].mxu0
      %2088 = vmatprep.mubr.bf16.mxu0 0
      %2089 = vmatmul.mubr.bf16.gmra.mrb[0].mxu0 %v892
      %v2090 = vpop.f32.mrb[0].mxu0
      %v2091 = vadd.f32 %v1994, %v2090
      %v2092 = vpop.f32.mrb[0].mxu0
      %v2093 = vpop.f32.mrb[0].mxu0
      %v2094 = vadd.f32 %v1997, %v2093
      %v2095 = vpop.f32.mrb[0].mxu0
      %2096 = vmatprep.mubr.bf16.mxu0 0
      %2097 = vmatmul.mubr.bf16.gmra.mrb[0].mxu0 %v893
      %v2098 = vpop.f32.mrb[0].mxu0
      %v2099 = vadd.f32 %v2002, %v2098
      %v2100 = vpop.f32.mrb[0].mxu0
      %v2101 = vpop.f32.mrb[0].mxu0
      %v2102 = vadd.f32 %v2005, %v2101
      %v2103 = vpop.f32.mrb[0].mxu0
      %2104 = vmatprep.mubr.bf16.mxu0 0
      %2105 = vmatmul.mubr.bf16.gmra.mrb[0].mxu0 %v894
      %v2106 = vpop.f32.mrb[0].mxu0
      %v2107 = vadd.f32 %v2010, %v2106
      %v2108 = vpop.f32.mrb[0].mxu0
      %v2109 = vpop.f32.mrb[0].mxu0
      %v2110 = vadd.f32 %v2013, %v2109
      %v2111 = vpop.f32.mrb[0].mxu0
      %2112 = vmatprep.mubr.bf16.mxu0 0
      %2113 = vmatmul.mubr.bf16.gmra.mrb[0].mxu0 %v895
      %v2114 = vpop.f32.mrb[0].mxu0
      %v2115 = vadd.f32 %v2018, %v2114
      %v2116 = vpop.f32.mrb[0].mxu0
      %v2117 = vpop.f32.mrb[0].mxu0
      %v2118 = vadd.f32 %v2021, %v2117
      %v2119 = vpop.f32.mrb[0].mxu0
      %2120 = vdwg.mxu0
      %vm2137 = vcmask 1045504
      %v2138 = vrot.slane %v2059, 2
      %v2139 = vrot.slane %v2062, 2
      %v2140 = vsel %vm2137, %v2138, %v2139
      %v2141 = vrot.slane %v2067, 2
      %v2142 = vsel %vm2137, %v2139, %v2141
      %v2143 = vrot.slane %v2070, 2
      %v2144 = vsel %vm2137, %v2141, %v2143
      %v2145 = vrot.slane %v2075, 2
      %v2146 = vsel %vm2137, %v2143, %v2145
      %v2147 = vrot.slane %v2078, 2
      %v2148 = vsel %vm2137, %v2145, %v2147
      %v2149 = vrot.slane %v2083, 2
      %v2150 = vsel %vm2137, %v2147, %v2149
      %v2151 = vrot.slane %v2086, 2
      %v2152 = vsel %vm2137, %v2149, %v2151
      %v2153 = vrot.slane %v2091, 2
      %v2154 = vsel %vm2137, %v2151, %v2153
      %v2155 = vrot.slane %v2094, 2
      %v2156 = vsel %vm2137, %v2153, %v2155
      %v2157 = vrot.slane %v2099, 2
      %v2158 = vsel %vm2137, %v2155, %v2157
      %v2159 = vrot.slane %v2102, 2
      %v2160 = vsel %vm2137, %v2157, %v2159
      %v2161 = vrot.slane %v2107, 2
      %v2162 = vsel %vm2137, %v2159, %v2161
      %v2163 = vrot.slane %v2110, 2
      %v2164 = vsel %vm2137, %v2161, %v2163
      %v2165 = vrot.slane %v2115, 2
      %v2166 = vsel %vm2137, %v2163, %v2165
      %v2167 = vrot.slane %v2118, 2
      %v2168 = vsel %vm2137, %v2165, %v2167
      %v2185 = vsel %vm2137, %v2167, 0.0
      %v2186 = vadd.f32 %v1672, %v2140
      %v2187 = vadd.f32 %v1675, %v2142
      %v2188 = vadd.f32 %v1680, %v2144
      %v2189 = vadd.f32 %v1683, %v2146
      %v2190 = vadd.f32 %v1688, %v2148
      %v2191 = vadd.f32 %v1691, %v2150
      %v2192 = vadd.f32 %v1696, %v2152
      %v2193 = vadd.f32 %v1699, %v2154
      %v2194 = vadd.f32 %v1704, %v2156
      %v2195 = vadd.f32 %v1707, %v2158
      %v2196 = vadd.f32 %v1712, %v2160
      %v2197 = vadd.f32 %v1715, %v2162
      %v2198 = vadd.f32 %v1720, %v2164
      %v2199 = vadd.f32 %v1723, %v2166
      %v2200 = vadd.f32 %v1728, %v2168
      %v2201 = vadd.f32 %v1731, %v2185
      %v2202 = vld [vmem:[%s7] sm:$0x1]
      %v2204 = vlaneseq
      %v2205 = vshrl.u32 %v2204, 7
      %v2206 = vsub.s32 0, %v2205
      %v2207 = vrot.slane %v2202, %v2206
      %v2209 = vmul.f32 %v2186, %v2207
      %v2210 = vmul.f32 %v2187, %v2207
      %v2211 = vmul.f32 %v2188, %v2207
      %v2212 = vmul.f32 %v2189, %v2207
      %v2213 = vmul.f32 %v2190, %v2207
      %v2214 = vmul.f32 %v2191, %v2207
      %v2215 = vmul.f32 %v2192, %v2207
      %v2216 = vmul.f32 %v2193, %v2207
      %v2217 = vmul.f32 %v2194, %v2207
      %v2218 = vmul.f32 %v2195, %v2207
      %v2219 = vmul.f32 %v2196, %v2207
      %v2220 = vmul.f32 %v2197, %v2207
      %v2221 = vmul.f32 %v2198, %v2207
      %v2222 = vmul.f32 %v2199, %v2207
      %v2223 = vmul.f32 %v2200, %v2207
      %v2224 = vmul.f32 %v2201, %v2207
      %v2225 = vld [vmem:[%s8] sm:$0x1]
      %v2227 = vlaneseq
      %v2228 = vshrl.u32 %v2227, 7
      %v2229 = vsub.s32 0, %v2228
      %v2230 = vrot.slane %v2225, %v2229
      %v2232 = vadd.f32 %v2209, %v2230
      %v2233 = vadd.f32 %v2210, %v2230
      %v2234 = vadd.f32 %v2211, %v2230
      %v2235 = vadd.f32 %v2212, %v2230
      %v2236 = vadd.f32 %v2213, %v2230
      %v2237 = vadd.f32 %v2214, %v2230
      %v2238 = vadd.f32 %v2215, %v2230
      %v2239 = vadd.f32 %v2216, %v2230
      %v2240 = vadd.f32 %v2217, %v2230
      %v2241 = vadd.f32 %v2218, %v2230
      %v2242 = vadd.f32 %v2219, %v2230
      %v2243 = vadd.f32 %v2220, %v2230
      %v2244 = vadd.f32 %v2221, %v2230
      %v2245 = vadd.f32 %v2222, %v2230
      %v2246 = vadd.f32 %v2223, %v2230
      %v2247 = vadd.f32 %v2224, %v2230
      %v2248 = vmax.f32 %v2232, 0.0
      %v2249 = vmax.f32 %v2233, 0.0
      %v2250 = vmax.f32 %v2234, 0.0
      %v2251 = vmax.f32 %v2235, 0.0
      %v2252 = vmax.f32 %v2236, 0.0
      %v2253 = vmax.f32 %v2237, 0.0
      %v2254 = vmax.f32 %v2238, 0.0
      %v2255 = vmax.f32 %v2239, 0.0
      %v2256 = vmax.f32 %v2240, 0.0
      %v2257 = vmax.f32 %v2241, 0.0
      %v2258 = vmax.f32 %v2242, 0.0
      %v2259 = vmax.f32 %v2243, 0.0
      %v2260 = vmax.f32 %v2244, 0.0
      %v2261 = vmax.f32 %v2245, 0.0
      %v2262 = vmax.f32 %v2246, 0.0
      %v2263 = vmax.f32 %v2247, 0.0
      %v2264 = vpack.c.bf16 %v2249, %v2248
      %v2265 = vpack.c.bf16 %v2251, %v2250
      %v2266 = vpack.c.bf16 %v2253, %v2252
      %v2267 = vpack.c.bf16 %v2255, %v2254
      %v2268 = vpack.c.bf16 %v2257, %v2256
      %v2269 = vpack.c.bf16 %v2259, %v2258
      %v2270 = vpack.c.bf16 %v2261, %v2260
      %v2271 = vpack.c.bf16 %v2263, %v2262
      %v2272 = vld [vmem:[%s4] sm:$0xf]
      %v2273 = vld [vmem:[%s4 + $0x4] sm:$0xf]
      %v2274 = vld [vmem:[%s4 + $0x8] sm:$0xf]
      %v2275 = vld [vmem:[%s4 + $0xc] sm:$0xf]
      %v2276 = vld [vmem:[%s4 + $0x10] sm:$0xf]
      %v2277 = vld [vmem:[%s4 + $0x14] sm:$0xf]
      %v2278 = vld [vmem:[%s4 + $0x18] sm:$0xf]
      %v2279 = vld [vmem:[%s4 + $0x1c] sm:$0xf]
      %v2280 = vld [vmem:[%s4 + $0x20] sm:$0xf]
      %v2281 = vld [vmem:[%s4 + $0x24] sm:$0xf]
      %v2282 = vld [vmem:[%s4 + $0x28] sm:$0xf]
      %v2283 = vld [vmem:[%s4 + $0x2c] sm:$0xf]
      %v2284 = vld [vmem:[%s4 + $0x30] sm:$0xf]
      %v2285 = vld [vmem:[%s4 + $0x34] sm:$0xf]
      %v2286 = vld [vmem:[%s4 + $0x38] sm:$0xf]
      %v2287 = vld [vmem:[%s4 + $0x3c] sm:$0xf]
      %v2304 = vunpack.c.l.b16 %v2272
      %v2305 = vunpack.c.l.b16 %v2273
      %v2306 = vunpack.c.l.b16 %v2274
      %v2307 = vunpack.c.l.b16 %v2275
      %v2308 = vunpack.c.l.b16 %v2276
      %v2309 = vunpack.c.l.b16 %v2277
      %v2310 = vunpack.c.l.b16 %v2278
      %v2311 = vunpack.c.l.b16 %v2279
      %v2312 = vunpack.c.l.b16 %v2280
      %v2313 = vunpack.c.l.b16 %v2281
      %v2314 = vunpack.c.l.b16 %v2282
      %v2315 = vunpack.c.l.b16 %v2283
      %v2316 = vunpack.c.l.b16 %v2284
      %v2317 = vunpack.c.l.b16 %v2285
      %v2318 = vunpack.c.l.b16 %v2286
      %v2319 = vunpack.c.l.b16 %v2287
      %v2320 = vpack.c.b16 %v2305, %v2304
      %v2321 = vpack.c.b16 %v2307, %v2306
      %v2322 = vpack.c.b16 %v2309, %v2308
      %v2323 = vpack.c.b16 %v2311, %v2310
      %v2324 = vpack.c.b16 %v2313, %v2312
      %v2325 = vpack.c.b16 %v2315, %v2314
      %v2326 = vpack.c.b16 %v2317, %v2316
      %v2327 = vpack.c.b16 %v2319, %v2318
      %2336 = vmatprep.subr.bf16.mxu0 0
      %2337 = vmatpush1.bf16.msra.mxu0 %v2320
      %2338 = vmatprep.subr.bf16.mxu0 0
      %2339 = vmatpush1.bf16.msra.mxu0 %v2321
      %2340 = vmatprep.subr.bf16.mxu0 0
      %2341 = vmatpush1.bf16.msra.mxu0 %v2322
      %2342 = vmatprep.subr.bf16.mxu0 0
      %2343 = vmatpush1.bf16.msra.mxu0 %v2323
      %2344 = vmatprep.subr.bf16.mxu0 0
      %2345 = vmatpush1.bf16.msra.mxu0 %v2324
      %2346 = vmatprep.subr.bf16.mxu0 0
      %2347 = vmatpush1.bf16.msra.mxu0 %v2325
      %2348 = vmatprep.subr.bf16.mxu0 0
      %2349 = vmatpush1.bf16.msra.mxu0 %v2326
      %2350 = vmatprep.subr.bf16.mxu0 0
      %2351 = vmatpush1.bf16.msra.mxu0 %v2327
      %2352 = vmatprep.subr.bf16.mxu0 0
      %2353 = vmatpush1.bf16.msra.mxu0 0
      %2354 = vmatprep.subr.bf16.mxu0 0
      %2355 = vmatpush1.bf16.msra.mxu0 0
      %2356 = vmatprep.subr.bf16.mxu0 0
      %2357 = vmatpush1.bf16.msra.mxu0 0
      %2358 = vmatprep.subr.bf16.mxu0 0
      %2359 = vmatpush1.bf16.msra.mxu0 0
      %2360 = vmatprep.subr.bf16.mxu0 0
      %2361 = vmatpush1.bf16.msra.mxu0 0
      %2362 = vmatprep.subr.bf16.mxu0 0
      %2363 = vmatpush1.bf16.msra.mxu0 0
      %2364 = vmatprep.subr.bf16.mxu0 0
      %2365 = vmatpush1.bf16.msra.mxu0 0
      %2366 = vmatprep.subr.bf16.mxu0 0
      %2367 = vmatpush1.bf16.msra.mxu0 0
      %2368 = vmatprep.mubr.bf16.mxu0 0
      %2369 = vmatmul.mubr.bf16.gmra.mrb[0].mxu0 %v2264
      %v2370 = vpop.f32.mrb[0].mxu0
      %v2371 = vadd.f32 0.0, %v2370
      %v2372 = vpop.f32.mrb[0].mxu0
      %v2373 = vpop.f32.mrb[0].mxu0
      %v2374 = vadd.f32 0.0, %v2373
      %v2375 = vpop.f32.mrb[0].mxu0
      %2376 = vmatprep.mubr.bf16.mxu0 0
      %2377 = vmatmul.mubr.bf16.gmra.mrb[0].mxu0 %v2265
      %v2378 = vpop.f32.mrb[0].mxu0
      %v2379 = vadd.f32 0.0, %v2378
      %v2380 = vpop.f32.mrb[0].mxu0
      %v2381 = vpop.f32.mrb[0].mxu0
      %v2382 = vadd.f32 0.0, %v2381
      %v2383 = vpop.f32.mrb[0].mxu0
      %2384 = vmatprep.mubr.bf16.mxu0 0
      %2385 = vmatmul.mubr.bf16.gmra.mrb[0].mxu0 %v2266
      %v2386 = vpop.f32.mrb[0].mxu0
      %v2387 = vadd.f32 0.0, %v2386
      %v2388 = vpop.f32.mrb[0].mxu0
      %v2389 = vpop.f32.mrb[0].mxu0
      %v2390 = vadd.f32 0.0, %v2389
      %v2391 = vpop.f32.mrb[0].mxu0
      %2392 = vmatprep.mubr.bf16.mxu0 0
      %2393 = vmatmul.mubr.bf16.gmra.mrb[0].mxu0 %v2267
      %v2394 = vpop.f32.mrb[0].mxu0
      %v2395 = vadd.f32 0.0, %v2394
      %v2396 = vpop.f32.mrb[0].mxu0
      %v2397 = vpop.f32.mrb[0].mxu0
      %v2398 = vadd.f32 0.0, %v2397
      %v2399 = vpop.f32.mrb[0].mxu0
      %2400 = vmatprep.mubr.bf16.mxu0 0
      %2401 = vmatmul.mubr.bf16.gmra.mrb[0].mxu0 %v2268
      %v2402 = vpop.f32.mrb[0].mxu0
      %v2403 = vadd.f32 0.0, %v2402
      %v2404 = vpop.f32.mrb[0].mxu0
      %v2405 = vpop.f32.mrb[0].mxu0
      %v2406 = vadd.f32 0.0, %v2405
      %v2407 = vpop.f32.mrb[0].mxu0
      %2408 = vmatprep.mubr.bf16.mxu0 0
      %2409 = vmatmul.mubr.bf16.gmra.mrb[0].mxu0 %v2269
      %v2410 = vpop.f32.mrb[0].mxu0
      %v2411 = vadd.f32 0.0, %v2410
      %v2412 = vpop.f32.mrb[0].mxu0
      %v2413 = vpop.f32.mrb[0].mxu0
      %v2414 = vadd.f32 0.0, %v2413
      %v2415 = vpop.f32.mrb[0].mxu0
      %2416 = vmatprep.mubr.bf16.mxu0 0
      %2417 = vmatmul.mubr.bf16.gmra.mrb[0].mxu0 %v2270
      %v2418 = vpop.f32.mrb[0].mxu0
      %v2419 = vadd.f32 0.0, %v2418
      %v2420 = vpop.f32.mrb[0].mxu0
      %v2421 = vpop.f32.mrb[0].mxu0
      %v2422 = vadd.f32 0.0, %v2421
      %v2423 = vpop.f32.mrb[0].mxu0
      %2424 = vmatprep.mubr.bf16.mxu0 0
      %2425 = vmatmul.mubr.bf16.gmra.mrb[0].mxu0 %v2271
      %v2426 = vpop.f32.mrb[0].mxu0
      %v2427 = vadd.f32 0.0, %v2426
      %v2428 = vpop.f32.mrb[0].mxu0
      %v2429 = vpop.f32.mrb[0].mxu0
      %v2430 = vadd.f32 0.0, %v2429
      %v2431 = vpop.f32.mrb[0].mxu0
      %2432 = vdwg.mxu0
      %v2433 = vunpack.c.l.bf16 %v390
      %v2434 = vunpack.c.l.bf16 %v391
      %v2435 = vunpack.c.l.bf16 %v392
      %v2436 = vunpack.c.l.bf16 %v393
      %v2437 = vunpack.c.l.bf16 %v394
      %v2438 = vunpack.c.l.bf16 %v395
      %v2439 = vunpack.c.l.bf16 %v396
      %v2440 = vunpack.c.l.bf16 %v397
      %v2441 = vunpack.c.l.bf16 %v398
      %v2442 = vunpack.c.l.bf16 %v399
      %v2443 = vunpack.c.l.bf16 %v400
      %v2444 = vunpack.c.l.bf16 %v401
      %v2445 = vunpack.c.l.bf16 %v402
      %v2446 = vunpack.c.l.bf16 %v403
      %v2447 = vunpack.c.l.bf16 %v404
      %v2448 = vunpack.c.l.bf16 %v405
      %v2465 = vrot.slane %v2433, 1
      %v2466 = vrot.slane %v2434, 1
      %v2467 = vsel %vm1347, %v2465, %v2466
      %v2468 = vrot.slane %v2435, 1
      %v2469 = vsel %vm1347, %v2466, %v2468
      %v2470 = vrot.slane %v2436, 1
      %v2471 = vsel %vm1347, %v2468, %v2470
      %v2472 = vrot.slane %v2437, 1
      %v2473 = vsel %vm1347, %v2470, %v2472
      %v2474 = vrot.slane %v2438, 1
      %v2475 = vsel %vm1347, %v2472, %v2474
      %v2476 = vrot.slane %v2439, 1
      %v2477 = vsel %vm1347, %v2474, %v2476
      %v2478 = vrot.slane %v2440, 1
      %v2479 = vsel %vm1347, %v2476, %v2478
      %v2480 = vrot.slane %v2441, 1
      %v2481 = vsel %vm1347, %v2478, %v2480
      %v2482 = vrot.slane %v2442, 1
      %v2483 = vsel %vm1347, %v2480, %v2482
      %v2484 = vrot.slane %v2443, 1
      %v2485 = vsel %vm1347, %v2482, %v2484
      %v2486 = vrot.slane %v2444, 1
      %v2487 = vsel %vm1347, %v2484, %v2486
      %v2488 = vrot.slane %v2445, 1
      %v2489 = vsel %vm1347, %v2486, %v2488
      %v2490 = vrot.slane %v2446, 1
      %v2491 = vsel %vm1347, %v2488, %v2490
      %v2492 = vrot.slane %v2447, 1
      %v2493 = vsel %vm1347, %v2490, %v2492
      %v2494 = vrot.slane %v2448, 1
      %v2495 = vsel %vm1347, %v2492, %v2494
      %v2512 = vsel %vm1347, %v2494, 0.0
      %v2513 = vld [vmem:[%s9] sm:$0x1]
      %v2515 = vlaneseq
      %v2516 = vshrl.u32 %v2515, 7
      %v2517 = vsub.s32 0, %v2516
      %v2518 = vrot.slane %v2513, %v2517
      %v2520 = vmul.f32 %v2371, %v2518
      %v2521 = vmul.f32 %v2374, %v2518
      %v2522 = vmul.f32 %v2379, %v2518
      %v2523 = vmul.f32 %v2382, %v2518
      %v2524 = vmul.f32 %v2387, %v2518
      %v2525 = vmul.f32 %v2390, %v2518
      %v2526 = vmul.f32 %v2395, %v2518
      %v2527 = vmul.f32 %v2398, %v2518
      %v2528 = vmul.f32 %v2403, %v2518
      %v2529 = vmul.f32 %v2406, %v2518
      %v2530 = vmul.f32 %v2411, %v2518
      %v2531 = vmul.f32 %v2414, %v2518
      %v2532 = vmul.f32 %v2419, %v2518
      %v2533 = vmul.f32 %v2422, %v2518
      %v2534 = vmul.f32 %v2427, %v2518
      %v2535 = vmul.f32 %v2430, %v2518
      %v2536 = vld [vmem:[%s10] sm:$0x1]
      %v2538 = vlaneseq
      %v2539 = vshrl.u32 %v2538, 7
      %v2540 = vsub.s32 0, %v2539
      %v2541 = vrot.slane %v2536, %v2540
      %v2543 = vadd.f32 %v2520, %v2541
      %v2544 = vadd.f32 %v2521, %v2541
      %v2545 = vadd.f32 %v2522, %v2541
      %v2546 = vadd.f32 %v2523, %v2541
      %v2547 = vadd.f32 %v2524, %v2541
      %v2548 = vadd.f32 %v2525, %v2541
      %v2549 = vadd.f32 %v2526, %v2541
      %v2550 = vadd.f32 %v2527, %v2541
      %v2551 = vadd.f32 %v2528, %v2541
      %v2552 = vadd.f32 %v2529, %v2541
      %v2553 = vadd.f32 %v2530, %v2541
      %v2554 = vadd.f32 %v2531, %v2541
      %v2555 = vadd.f32 %v2532, %v2541
      %v2556 = vadd.f32 %v2533, %v2541
      %v2557 = vadd.f32 %v2534, %v2541
      %v2558 = vadd.f32 %v2535, %v2541
      %v2559 = vadd.f32 %v2543, %v2467
      %v2560 = vadd.f32 %v2544, %v2469
      %v2561 = vadd.f32 %v2545, %v2471
      %v2562 = vadd.f32 %v2546, %v2473
      %v2563 = vadd.f32 %v2547, %v2475
      %v2564 = vadd.f32 %v2548, %v2477
      %v2565 = vadd.f32 %v2549, %v2479
      %v2566 = vadd.f32 %v2550, %v2481
      %v2567 = vadd.f32 %v2551, %v2483
      %v2568 = vadd.f32 %v2552, %v2485
      %v2569 = vadd.f32 %v2553, %v2487
      %v2570 = vadd.f32 %v2554, %v2489
      %v2571 = vadd.f32 %v2555, %v2491
      %v2572 = vadd.f32 %v2556, %v2493
      %v2573 = vadd.f32 %v2557, %v2495
      %v2574 = vadd.f32 %v2558, %v2512
      %v2575 = vmax.f32 %v2559, 0.0
      %v2576 = vmax.f32 %v2560, 0.0
      %v2577 = vmax.f32 %v2561, 0.0
      %v2578 = vmax.f32 %v2562, 0.0
      %v2579 = vmax.f32 %v2563, 0.0
      %v2580 = vmax.f32 %v2564, 0.0
      %v2581 = vmax.f32 %v2565, 0.0
      %v2582 = vmax.f32 %v2566, 0.0
      %v2583 = vmax.f32 %v2567, 0.0
      %v2584 = vmax.f32 %v2568, 0.0
      %v2585 = vmax.f32 %v2569, 0.0
      %v2586 = vmax.f32 %v2570, 0.0
      %v2587 = vmax.f32 %v2571, 0.0
      %v2588 = vmax.f32 %v2572, 0.0
      %v2589 = vmax.f32 %v2573, 0.0
      %v2590 = vmax.f32 %v2574, 0.0
      %v2591 = vpack.c.bf16 %v2576, %v2575
      %v2592 = vpack.c.bf16 %v2578, %v2577
      %v2593 = vpack.c.bf16 %v2580, %v2579
      %v2594 = vpack.c.bf16 %v2582, %v2581
      %v2595 = vpack.c.bf16 %v2584, %v2583
      %v2596 = vpack.c.bf16 %v2586, %v2585
      %v2597 = vpack.c.bf16 %v2588, %v2587
      %v2598 = vpack.c.bf16 %v2590, %v2589
      %v2607 = vunpack.c.l.b16 %v2591
      %v2608 = vunpack.c.h.b16 %v2591
      %v2609 = vunpack.c.l.b16 %v2592
      %v2610 = vunpack.c.h.b16 %v2592
      %v2611 = vunpack.c.l.b16 %v2593
      %v2612 = vunpack.c.h.b16 %v2593
      %v2613 = vunpack.c.l.b16 %v2594
      %v2614 = vunpack.c.h.b16 %v2594
      %v2615 = vunpack.c.l.b16 %v2595
      %v2616 = vunpack.c.h.b16 %v2595
      %v2617 = vunpack.c.l.b16 %v2596
      %v2618 = vunpack.c.h.b16 %v2596
      %v2619 = vunpack.c.l.b16 %v2597
      %v2620 = vunpack.c.h.b16 %v2597
      %v2621 = vunpack.c.l.b16 %v2598
      %v2622 = vunpack.c.h.b16 %v2598
      %v2623 = vpack.c.b16 %v2607, %v2607
      %v2624 = vpack.c.b16 %v2608, %v2608
      %v2625 = vpack.c.b16 %v2609, %v2609
      %v2626 = vpack.c.b16 %v2610, %v2610
      %v2627 = vpack.c.b16 %v2611, %v2611
      %v2628 = vpack.c.b16 %v2612, %v2612
      %v2629 = vpack.c.b16 %v2613, %v2613
      %v2630 = vpack.c.b16 %v2614, %v2614
      %v2631 = vpack.c.b16 %v2615, %v2615
      %v2632 = vpack.c.b16 %v2616, %v2616
      %v2633 = vpack.c.b16 %v2617, %v2617
      %v2634 = vpack.c.b16 %v2618, %v2618
      %v2635 = vpack.c.b16 %v2619, %v2619
      %v2636 = vpack.c.b16 %v2620, %v2620
      %v2637 = vpack.c.b16 %v2621, %v2621
      %v2638 = vpack.c.b16 %v2622, %v2622
      %2655 = vst [vmem:[%s386] sm:$0xf] %v2623
      %2656 = vst [vmem:[%s386 + $0x4] sm:$0xf] %v2624
      %2657 = vst [vmem:[%s386 + $0x8] sm:$0xf] %v2625
      %2658 = vst [vmem:[%s386 + $0xc] sm:$0xf] %v2626
      %2659 = vst [vmem:[%s386 + $0x10] sm:$0xf] %v2627
      %2660 = vst [vmem:[%s386 + $0x14] sm:$0xf] %v2628
      %2661 = vst [vmem:[%s386 + $0x18] sm:$0xf] %v2629
      %2662 = vst [vmem:[%s386 + $0x1c] sm:$0xf] %v2630
      %2663 = vst [vmem:[%s386 + $0x20] sm:$0xf] %v2631
      %2664 = vst [vmem:[%s386 + $0x24] sm:$0xf] %v2632
      %2665 = vst [vmem:[%s386 + $0x28] sm:$0xf] %v2633
      %2666 = vst [vmem:[%s386 + $0x2c] sm:$0xf] %v2634
      %2667 = vst [vmem:[%s386 + $0x30] sm:$0xf] %v2635
      %2668 = vst [vmem:[%s386 + $0x34] sm:$0xf] %v2636
      %2669 = vst [vmem:[%s386 + $0x38] sm:$0xf] %v2637
      %2670 = vst [vmem:[%s386 + $0x3c] sm:$0xf] %v2638
      %p2671 = scmp.lt.s32.totalorder %s22, 1
      %s2672 = scalar_select %p2671, %s22, 1
      %s2673 = smul.addr %s2672, 16
      %s2674 = smul.addr %s2673, 4
      %s2675 = scalar_lea.vmem %s11, %s2674
      // Predicated region
      $region65: #{bottleneck_forward.1} parent=63 // pred_check
        %p2676 = pneg %p276
      $region66: #{bottleneck_forward.1} parent=63 // pred_check_branch
        %2678 = sbr.rel (%p2676) target = $region68
      $region67: #{bottleneck_forward.1} parent=63 // pred_region
        _
      $region68: #{bottleneck_forward.1} parent=63 // pred_fallthru
        _
    $region64: #{bottleneck_forward.1} parent=5 // pred_fallthru
      _
    %p2679 = scmp.le.s32.totalorder 2, %s17
    // Predicated region
    $region69: #{bottleneck_forward.1} parent=5 // pred_check
      %p2680 = pneg %p2679
    $region70: #{bottleneck_forward.1} parent=5 // pred_check_branch
      %2682 = sbr.rel (%p2680) target = $region72
    $region71: #{bottleneck_forward.1} parent=5 // pred_region
      %s2683 = ssub.s32 %s17, 2
      // Predicated region
      $region73: #{bottleneck_forward.1} parent=71 // pred_check
        %p2684 = pneg %p282
      $region74: #{bottleneck_forward.1} parent=71 // pred_check_branch
        %2686 = sbr.rel (%p2684) target = $region76
      $region75: #{bottleneck_forward.1} parent=71 // pred_region
        %p2687 = scmp.lt.s32.totalorder %s23, 1
        %s2688 = scalar_select %p2687, %s23, 1
        %s2689 = smul.addr %s2688, 16
        %s2690 = smul.addr %s2689, 4
        %s2691 = scalar_lea.vmem %s11, %s2690
      $region76: #{bottleneck_forward.1} parent=71 // pred_fallthru
        _
    $region72: #{bottleneck_forward.1} parent=5 // pred_fallthru
      _
  $region6: #{bottleneck_forward.1} parent=0 // loop_footer
    %s21 = sadd.s32 1, %s17
  $region7: #{bottleneck_forward.1} parent=0 // loop_footer_branch
    %16 = sbr.rel target = $region3
  $region8: #{bottleneck_forward.1} parent=0 // loop_exit
    _

</llo_original>
